<compile_context>
chip_gen: v5e
topology: v5e:2x2
jax: 0.10.0
libtpu: 0.0.40
codegen_flags: <defaults>
</compile_context>

<pallas_src>
import functools
import math

import jax
import jax.numpy as jnp
from jax.experimental import pallas as pl
from jax.experimental.pallas import tpu as pltpu


# ----------------------------- in-kernel helpers -----------------------------

def _layernorm(x, g, b, eps=1e-6):
    # TODO(synk): eps=1e-6 matches the custom LayerNorm used by BERT4Rec-style
    # impls; torch.nn.LayerNorm default is 1e-5 — verify against the reference.
    mu = jnp.mean(x, axis=-1, keepdims=True)
    var = jnp.mean((x - mu) ** 2, axis=-1, keepdims=True)
    return (x - mu) * jax.lax.rsqrt(var + eps) * g + b


def _gelu(x):
    # tanh approximation (matches the custom GELU in BERT4Rec-style impls).
    return 0.5 * x * (1.0 + jnp.tanh(
        math.sqrt(2.0 / math.pi) * (x + 0.044715 * x * x * x)))


def _round_up(n, m):
    return ((n + m - 1) // m) * m


def _choose_block_b(batch, seq_len, target_rows=256):
    """Sequences per grid step: fill >=target_rows MXU rows if possible,
    otherwise keep >=2 grid steps so v7x can split across TensorCores."""
    for d in range(1, batch + 1):
        if batch % d == 0 and d * seq_len >= target_rows:
            return d
    if batch % 2 == 0 and batch >= 2:
        return batch // 2
    return batch


# ------------------------- transformer block kernel --------------------------

def transformer_block_kernel(x_ref, mask_ref,
                             wqkv_ref, bqkv_ref, wo_ref,
                             w1_ref, b1_ref, w2_ref, vec_ref,
                             o_ref, *, num_heads, block_b, seq_len):
    Bt, S, H = block_b, seq_len, num_heads
    x = x_ref[...].astype(jnp.float32)   # (Bt*S, D), slab stored in bf16
    rows, D = x.shape
    dh = D // H

    vec = vec_ref[...]                   # (8, D) f32 packed small params
    bo, b2 = vec[0:1], vec[1:2]
    ln1_g, ln1_b = vec[2:3], vec[3:4]
    ln2_g, ln2_b = vec[4:5], vec[5:6]

    bias = mask_ref[...]                 # (Bt, 1, S): 0 = attend, -1e9 = pad

    # --- multi-head self attention (pre-norm, residual) ---
    h = _layernorm(x, ln1_g, ln1_b)
    qkv = (jnp.dot(h.astype(jnp.bfloat16), wqkv_ref[...],
                   preferred_element_type=jnp.float32)
           + bqkv_ref[...]).astype(jnp.bfloat16)             # (rows, 3D) bf16
    q, k, v = qkv[:, :D], qkv[:, D:2 * D], qkv[:, 2 * D:]

    def to_heads(t):                     # (rows, D) -> (Bt*H, S, dh), bf16
        return (t.reshape(Bt, S, H, dh).transpose(0, 2, 1, 3)
                .reshape(Bt * H, S, dh))

    qh, kh, vh = to_heads(q), to_heads(k), to_heads(v)

    # 1/sqrt(dh) already folded into Wq/bq at prepare_params time.
    s = jnp.einsum('nqd,nkd->nqk', qh, kh,
                   preferred_element_type=jnp.float32)        # (Bt*H, S, S)
    s = s.reshape(Bt, H, S, S) + bias[:, :, None, :]          # mask pad keys
    m = jnp.max(s, axis=-1, keepdims=True)
    e = jnp.exp(s - m)
    l = jnp.sum(e, axis=-1, keepdims=True)                    # (Bt, H, S, 1) f32
    p = e.astype(jnp.bfloat16).reshape(Bt * H, S, S)          # unnormalized

    ctx = jnp.einsum('nqk,nkd->nqd', p, vh,
                     preferred_element_type=jnp.float32)      # (Bt*H, S, dh)
    # normalize AFTER the PV matmul: O(rows*D) multiplies instead of O(rows*H*S)
    ctx = (ctx * pl.reciprocal(l.reshape(Bt * H, S, 1), approx=True)
           ).astype(jnp.bfloat16)
    ctx = (ctx.reshape(Bt, H, S, dh).transpose(0, 2, 1, 3)
           .reshape(rows, D))                                 # bf16 relayout

    attn = (jnp.dot(ctx, wo_ref[...],
                    preferred_element_type=jnp.float32) + bo)
    # TODO(synk): dropout layers are identity here (deterministic / eval semantics).
    x1 = x + attn

    # --- position-wise feed-forward (pre-norm, residual) ---
    h2 = _layernorm(x1, ln2_g, ln2_b)
    ff = (jnp.dot(h2.astype(jnp.bfloat16), w1_ref[...],
                  preferred_element_type=jnp.float32) + b1_ref[...])
    ff = _gelu(ff)
    ff = (jnp.dot(ff.astype(jnp.bfloat16), w2_ref[...],
                  preferred_element_type=jnp.float32) + b2)
    o_ref[...] = (x1 + ff).astype(o_ref.dtype)


def transformer_block(x2d, mask_bias, blk, *, num_heads, seq_len, block_b):
    """x2d: (B*S, D) bf16 slab; mask_bias: (B, 1, S) f32 (0 / -1e9)."""
    R, D = x2d.shape
    B = R // seq_len
    rows = block_b * seq_len
    grid = (B // block_b,)

    weights = [blk["wqkv"], blk["bqkv"], blk["wo"],
               blk["w1"], blk["b1"], blk["w2"], blk["vec"]]

    # Whole-array VMEM residency for the constant-index weights: single buffer,
    # no per-step re-DMA, no double-buffer duplication.
    weight_specs = [pl.BlockSpec(memory_space=pltpu.MemorySpace.VMEM)
                    for _ in weights]

    in_specs = ([pl.BlockSpec((rows, D), lambda b: (b, 0)),
                 pl.BlockSpec((block_b, 1, seq_len), lambda b: (b, 0, 0))]
                + weight_specs)

    return pl.pallas_call(
        functools.partial(transformer_block_kernel, num_heads=num_heads,
                          block_b=block_b, seq_len=seq_len),
        out_shape=jax.ShapeDtypeStruct((R, D), jnp.bfloat16),
        grid=grid,
        in_specs=in_specs,
        out_specs=pl.BlockSpec((rows, D), lambda b: (b, 0)),
        compiler_params=pltpu.CompilerParams(
            dimension_semantics=("parallel",),
            vmem_limit_bytes=56 * 1024 * 1024),
    )(x2d, mask_bias, *weights)


# ----------------------------- output head kernel ----------------------------

def logits_kernel(x_ref, w_ref, b_ref, o_ref):
    o_ref[...] = (jnp.dot(x_ref[...], w_ref[...],
                          preferred_element_type=jnp.float32)
                  + b_ref[...]).astype(o_ref.dtype)


def logits_proj(x_flat, w_pad, b_pad, *, vocab_size, tile_n=256):
    """x_flat: (N, D) bf16; w_pad: (D, Vp) bf16; b_pad: (1, Vp) f32.
    Vocab axis is the OUTER grid dim so the big weight is streamed exactly once
    while the much smaller activation slab re-streams."""
    N, D = x_flat.shape
    Vp = w_pad.shape[1]

    tile_n = min(tile_n, _round_up(N, 8))
    Np = _round_up(N, tile_n)
    x_p = jnp.pad(x_flat, ((0, Np - N), (0, 0))) if Np != N else x_flat

    if Vp % 512 == 0:
        tile_v = 512
    elif Vp % 256 == 0:
        tile_v = 256
    else:
        tile_v = 128

    out = pl.pallas_call(
        logits_kernel,
        out_shape=jax.ShapeDtypeStruct((Np, Vp), jnp.float32),
        grid=(Vp // tile_v, Np // tile_n),          # vocab outer, rows inner
        in_specs=[pl.BlockSpec((tile_n, D), lambda v, r: (r, 0)),
                  pl.BlockSpec((D, tile_v), lambda v, r: (0, v)),
                  pl.BlockSpec((1, tile_v), lambda v, r: (0, v))],
        out_specs=pl.BlockSpec((tile_n, tile_v), lambda v, r: (r, v)),
        compiler_params=pltpu.CompilerParams(
            dimension_semantics=("parallel", "parallel"),
            vmem_limit_bytes=32 * 1024 * 1024),
    )(x_p, w_pad, b_pad)
    # TODO(synk): consumers that tolerate lane-padded logits should skip this
    # slice (it is an extra HBM pass over the logits for very large vocabs).
    return out[:N, :vocab_size]


# --------------------------------- CBIT model --------------------------------

def init_params(key, *, num_items, max_len, hidden, num_heads, num_blocks):
    """Reference f32 parameters (mirrors the PyTorch module)."""
    D = hidden
    ks = jax.random.split(key, 4 + num_blocks)

    def nrm(k, shape, s=0.02):
        return jax.random.normal(k, shape, dtype=jnp.float32) * s

    params = {
        # item ids in [1, num_items], 0 = pad, num_items+1 = mask token
        "tok_emb": nrm(ks[0], (num_items + 2, D)),
        "pos_emb": nrm(ks[1], (max_len, D)),
        "out_w": nrm(ks[2], (D, num_items + 1)),
        "out_b": jnp.zeros((1, num_items + 1), jnp.float32),
        "blocks": [],
    }
    for i in range(num_blocks):
        bk = jax.random.split(ks[4 + i], 4)
        # packed small vectors: rows = [bo, b2, ln1_g, ln1_b, ln2_g, ln2_b, 0, 0]
        vec = jnp.zeros((8, D), jnp.float32).at[2].set(1.0).at[4].set(1.0)
        params["blocks"].append({
            "wqkv": nrm(bk[0], (D, 3 * D)),               # fused Wq | Wk | Wv
            "bqkv": jnp.zeros((1, 3 * D), jnp.float32),
            "wo": nrm(bk[1], (D, D)),
            "w1": nrm(bk[2], (D, 4 * D)),
            "b1": jnp.zeros((1, 4 * D), jnp.float32),
            "w2": nrm(bk[3], (4 * D, D)),
            "vec": vec,
        })
    return params


def prepare_params(params, *, num_heads):
    """One-time kernel-ready parameter prep: bf16 weight casts, attention
    scale folded into Wq/bq, vocab weight/bias padded to a lane multiple."""
    D = params["tok_emb"].shape[1]
    dh = D // num_heads
    scale = 1.0 / math.sqrt(dh)

    V1 = params["out_w"].shape[1]
    Vp = _round_up(V1, 128)

    prepped = {
        "tok_emb": params["tok_emb"],
        "pos_emb": params["pos_emb"],
        "out_w": jnp.pad(params["out_w"], ((0, 0), (0, Vp - V1))
                         ).astype(jnp.bfloat16),
        "out_b": jnp.pad(params["out_b"], ((0, 0), (0, Vp - V1))),
        "blocks": [],
    }
    for blk in params["blocks"]:
        wqkv = blk["wqkv"].at[:, :D].multiply(scale)   # fold 1/sqrt(dh) into Wq
        bqkv = blk["bqkv"].at[:, :D].multiply(scale)
        prepped["blocks"].append({
            "wqkv": wqkv.astype(jnp.bfloat16),
            "bqkv": bqkv,
            "wo": blk["wo"].astype(jnp.bfloat16),
            "w1": blk["w1"].astype(jnp.bfloat16),
            "b1": blk["b1"],
            "w2": blk["w2"].astype(jnp.bfloat16),
            "vec": blk["vec"],
        })
    return prepped


def cbit_forward(seqs, params, *, num_heads, vocab_size):
    """Mirror of CBIT.forward: returns (inputs_encoding (B,S,D), logits (B*S,V+1))."""
    B, S = seqs.shape
    D = params["tok_emb"].shape[1]

    # BERT embedding (token + position); gather is plain-JAX glue.
    x = params["tok_emb"][seqs] + params["pos_emb"][None, :S, :]
    # TODO(synk): embedding dropout omitted (deterministic / eval semantics).

    # key-padding mask additive bias, computed once and reused by every block.
    mask_bias = jnp.where(seqs > 0, 0.0, -1e9).astype(jnp.float32)[:, None, :]

    block_b = _choose_block_b(B, S)
    x2d = x.reshape(B * S, D).astype(jnp.bfloat16)   # bf16 inter-layer slab
    for blk in params["blocks"]:
        x2d = transformer_block(x2d, mask_bias, blk, num_heads=num_heads,
                                seq_len=S, block_b=block_b)

    inputs_encoding = x2d.astype(jnp.float32).reshape(B, S, D)   # (B, S, D)
    logits = logits_proj(x2d, params["out_w"], params["out_b"],
                         vocab_size=vocab_size)                  # (B*S, V+1)
    return inputs_encoding, logits


# ----------------------------------- main ------------------------------------

if __name__ == "__main__":
    B, S = 2, 8            # batch, max_len
    D = 32                 # hidden_size / bert_hidden_units (small)
    H = 4                  # bert_num_heads
    NBLOCKS = 2            # bert_num_blocks
    NUM_ITEMS = 100        # vocab -> logits over NUM_ITEMS + 1

    key = jax.random.PRNGKey(0)
    pkey, skey = jax.random.split(key)
    raw_params = init_params(pkey, num_items=NUM_ITEMS, max_len=S, hidden=D,
                             num_heads=H, num_blocks=NBLOCKS)
    params = prepare_params(raw_params, num_heads=H)   # one-time bf16 / pad prep

    seqs = jax.random.randint(skey, (B, S), 1, NUM_ITEMS + 2, dtype=jnp.int32)
    seqs = seqs.at[0, :2].set(0)   # some padding to exercise the attention mask

    fwd = jax.jit(functools.partial(cbit_forward, num_heads=H,
                                    vocab_size=NUM_ITEMS + 1))
    enc, logits = fwd(seqs, params)
    jax.block_until_ready((enc, logits))

    assert enc.shape == (B, S, D)
    assert logits.shape == (B * S, NUM_ITEMS + 1)
    assert bool(jnp.all(jnp.isfinite(enc))) and bool(jnp.all(jnp.isfinite(logits)))
    print("KERNEL_OK")
</pallas_src>

<mosaic_0001>
module attributes {stable_mosaic.version = 11 : i64} {
  func.func @logits_kernel(%arg0: i32, %arg1: i32, %arg2: memref<16x32xbf16, #tpu.memory_space<vmem>>, %arg3: memref<32x128xbf16, #tpu.memory_space<vmem>>, %arg4: memref<1x128xf32, #tpu.memory_space<vmem>>, %arg5: memref<16x128xf32, #tpu.memory_space<vmem>>) attributes {dimension_semantics = [#tpu.dimension_semantics<parallel>, #tpu.dimension_semantics<parallel>], iteration_bounds = array<i64: 1, 1>, scalar_prefetch = 0 : i64, scratch_operands = 0 : i64, tpu.core_type = #tpu.core_type<tc>, window_params = [{transform_indices = @transform_0, window_bounds = array<i64: 16, 32>}, {transform_indices = @transform_1, window_bounds = array<i64: 32, 128>}, {transform_indices = @transform_2, window_bounds = array<i64: 1, 128>}, {transform_indices = @transform_3, window_bounds = array<i64: 16, 128>}]} {
    %c0 = arith.constant 0 : index
    %c0_0 = arith.constant 0 : index
    %0 = vector.load %arg2[%c0, %c0_0] : memref<16x32xbf16, #tpu.memory_space<vmem>>, vector<16x32xbf16>
    %c0_1 = arith.constant 0 : index
    %c0_2 = arith.constant 0 : index
    %1 = vector.load %arg3[%c0_1, %c0_2] : memref<32x128xbf16, #tpu.memory_space<vmem>>, vector<32x128xbf16>
    %cst = arith.constant dense<0.000000e+00> : vector<16x128xf32>
    %2 = tpu.matmul %0, %1, %cst {dimension_numbers = #tpu.dot_dimension_numbers<[1], [0], [0], [1], [0, 0, 1, 1], [], []>} : vector<16x32xbf16>, vector<32x128xbf16>, vector<16x128xf32> -> vector<16x128xf32>
    %c0_3 = arith.constant 0 : index
    %c0_4 = arith.constant 0 : index
    %3 = vector.load %arg4[%c0_3, %c0_4] : memref<1x128xf32, #tpu.memory_space<vmem>>, vector<1x128xf32>
    %4 = vector.broadcast %3 : vector<1x128xf32> to vector<16x128xf32>
    %5 = arith.addf %2, %4 : vector<16x128xf32>
    %c0_5 = arith.constant 0 : index
    %c0_6 = arith.constant 0 : index
    %6 = vector.load %arg5[%c0_5, %c0_6] : memref<16x128xf32, #tpu.memory_space<vmem>>, vector<16x128xf32>
    tpu.vector_store %arg5[%c0_5, %c0_6], %5 {strides = array<i32>} : memref<16x128xf32, #tpu.memory_space<vmem>>, vector<16x128xf32>,
    return
  }
  func.func @transform_0(%arg0: i32, %arg1: i32) -> (i32, i32) {
    %c0_i32 = arith.constant 0 : i32
    %c0_i32_0 = arith.constant 0 : i32
    return %arg1, %c0_i32 : i32, i32
  }
  func.func @transform_1(%arg0: i32, %arg1: i32) -> (i32, i32) {
    %c0_i32 = arith.constant 0 : i32
    %c0_i32_0 = arith.constant 0 : i32
    return %c0_i32, %arg0 : i32, i32
  }
  func.func @transform_2(%arg0: i32, %arg1: i32) -> (i32, i32) {
    %c0_i32 = arith.constant 0 : i32
    %c0_i32_0 = arith.constant 0 : i32
    return %c0_i32, %arg0 : i32, i32
  }
  func.func @transform_3(%arg0: i32, %arg1: i32) -> (i32, i32) {
    %c0_i32 = arith.constant 0 : i32
    return %arg1, %arg0 : i32, i32
  }
}

module attributes {stable_mosaic.version = 11 : i64} {
  func.func @transformer_block_kernel(%arg0: i32, %arg1: memref<8x32xbf16, #tpu.memory_space<vmem>>, %arg2: memref<1x1x8xf32, #tpu.memory_space<vmem>>, %arg3: memref<32x96xbf16, #tpu.memory_space<vmem>>, %arg4: memref<1x96xf32, #tpu.memory_space<vmem>>, %arg5: memref<32x32xbf16, #tpu.memory_space<vmem>>, %arg6: memref<32x128xbf16, #tpu.memory_space<vmem>>, %arg7: memref<1x128xf32, #tpu.memory_space<vmem>>, %arg8: memref<128x32xbf16, #tpu.memory_space<vmem>>, %arg9: memref<8x32xf32, #tpu.memory_space<vmem>>, %arg10: memref<8x32xbf16, #tpu.memory_space<vmem>>) attributes {dimension_semantics = [#tpu.dimension_semantics<parallel>], iteration_bounds = array<i64: 2>, scalar_prefetch = 0 : i64, scratch_operands = 0 : i64, tpu.core_type = #tpu.core_type<tc>, window_params = [{transform_indices = @transform_0, window_bounds = array<i64: 8, 32>}, {transform_indices = @transform_1, window_bounds = array<i64: 1, 1, 8>}, {pipeline_mode = #tpu.pipeline_mode<synchronous>, transform_indices = @transform_2, window_bounds = array<i64: 32, 96>}, {pipeline_mode = #tpu.pipeline_mode<synchronous>, transform_indices = @transform_3, window_bounds = array<i64: 1, 96>}, {pipeline_mode = #tpu.pipeline_mode<synchronous>, transform_indices = @transform_4, window_bounds = array<i64: 32, 32>}, {pipeline_mode = #tpu.pipeline_mode<synchronous>, transform_indices = @transform_5, window_bounds = array<i64: 32, 128>}, {pipeline_mode = #tpu.pipeline_mode<synchronous>, transform_indices = @transform_6, window_bounds = array<i64: 1, 128>}, {pipeline_mode = #tpu.pipeline_mode<synchronous>, transform_indices = @transform_7, window_bounds = array<i64: 128, 32>}, {pipeline_mode = #tpu.pipeline_mode<synchronous>, transform_indices = @transform_8, window_bounds = array<i64: 8, 32>}, {transform_indices = @transform_9, window_bounds = array<i64: 8, 32>}]} {
    %c0 = arith.constant 0 : index
    %c0_0 = arith.constant 0 : index
    %0 = vector.load %arg1[%c0, %c0_0] : memref<8x32xbf16, #tpu.memory_space<vmem>>, vector<8x32xbf16>
    %1 = arith.extf %0 : vector<8x32xbf16> to vector<8x32xf32>
    %c0_1 = arith.constant 0 : index
    %c0_2 = arith.constant 0 : index
    %2 = vector.load %arg9[%c0_1, %c0_2] : memref<8x32xf32, #tpu.memory_space<vmem>>, vector<8x32xf32>
    %3 = vector.extract_strided_slice %2 {offsets = [0, 0], sizes = [1, 32], strides = [1, 1]} : vector<8x32xf32> to vector<1x32xf32>
    %4 = vector.extract_strided_slice %2 {offsets = [1, 0], sizes = [1, 32], strides = [1, 1]} : vector<8x32xf32> to vector<1x32xf32>
    %5 = vector.extract_strided_slice %2 {offsets = [2, 0], sizes = [1, 32], strides = [1, 1]} : vector<8x32xf32> to vector<1x32xf32>
    %6 = vector.extract_strided_slice %2 {offsets = [3, 0], sizes = [1, 32], strides = [1, 1]} : vector<8x32xf32> to vector<1x32xf32>
    %7 = vector.extract_strided_slice %2 {offsets = [4, 0], sizes = [1, 32], strides = [1, 1]} : vector<8x32xf32> to vector<1x32xf32>
    %8 = vector.extract_strided_slice %2 {offsets = [5, 0], sizes = [1, 32], strides = [1, 1]} : vector<8x32xf32> to vector<1x32xf32>
    %c0_3 = arith.constant 0 : index
    %c0_4 = arith.constant 0 : index
    %c0_5 = arith.constant 0 : index
    %9 = vector.load %arg2[%c0_3, %c0_4, %c0_5] : memref<1x1x8xf32, #tpu.memory_space<vmem>>, vector<1x1x8xf32>
    %cst = arith.constant dense<0.000000e+00> : vector<8xf32>
    %10 = vector.multi_reduction <add>, %1, %cst [1] : vector<8x32xf32> to vector<8xf32>
    %11 = vector.shape_cast %10 : vector<8xf32> to vector<8x1xf32>
    %cst_6 = arith.constant 3.200000e+01 : f32
    %12 = vector.broadcast %cst_6 : f32 to vector<8x1xf32>
    %13 = arith.divf %11, %12 : vector<8x1xf32>
    %14 = vector.broadcast %13 : vector<8x1xf32> to vector<8x32xf32>
    %15 = arith.subf %1, %14 : vector<8x32xf32>
    %16 = arith.mulf %15, %15 : vector<8x32xf32>
    %cst_7 = arith.constant dense<0.000000e+00> : vector<8xf32>
    %17 = vector.multi_reduction <add>, %16, %cst_7 [1] : vector<8x32xf32> to vector<8xf32>
    %18 = vector.shape_cast %17 : vector<8xf32> to vector<8x1xf32>
    %cst_8 = arith.constant 3.200000e+01 : f32
    %19 = vector.broadcast %cst_8 : f32 to vector<8x1xf32>
    %20 = arith.divf %18, %19 : vector<8x1xf32>
    %21 = vector.broadcast %13 : vector<8x1xf32> to vector<8x32xf32>
    %22 = arith.subf %1, %21 : vector<8x32xf32>
    %cst_9 = arith.constant 9.99999997E-7 : f32
    %23 = vector.broadcast %cst_9 : f32 to vector<8x1xf32>
    %24 = arith.addf %20, %23 : vector<8x1xf32>
    %25 = math.rsqrt %24 : vector<8x1xf32>
    %26 = vector.broadcast %25 : vector<8x1xf32> to vector<8x32xf32>
    %27 = arith.mulf %22, %26 : vector<8x32xf32>
    %28 = vector.broadcast %5 : vector<1x32xf32> to vector<8x32xf32>
    %29 = arith.mulf %27, %28 : vector<8x32xf32>
    %30 = vector.broadcast %6 : vector<1x32xf32> to vector<8x32xf32>
    %31 = arith.addf %29, %30 : vector<8x32xf32>
    %32 = arith.truncf %31 : vector<8x32xf32> to vector<8x32xbf16>
    %c0_10 = arith.constant 0 : index
    %c0_11 = arith.constant 0 : index
    %33 = vector.load %arg3[%c0_10, %c0_11] : memref<32x96xbf16, #tpu.memory_space<vmem>>, vector<32x96xbf16>
    %cst_12 = arith.constant dense<0.000000e+00> : vector<8x96xf32>
    %34 = tpu.matmul %32, %33, %cst_12 {dimension_numbers = #tpu.dot_dimension_numbers<[1], [0], [0], [1], [0, 0, 1, 1], [], []>} : vector<8x32xbf16>, vector<32x96xbf16>, vector<8x96xf32> -> vector<8x96xf32>
    %c0_13 = arith.constant 0 : index
    %c0_14 = arith.constant 0 : index
    %35 = vector.load %arg4[%c0_13, %c0_14] : memref<1x96xf32, #tpu.memory_space<vmem>>, vector<1x96xf32>
    %36 = vector.broadcast %35 : vector<1x96xf32> to vector<8x96xf32>
    %37 = arith.addf %34, %36 : vector<8x96xf32>
    %38 = arith.truncf %37 : vector<8x96xf32> to vector<8x96xbf16>
    %39 = vector.extract_strided_slice %38 {offsets = [0, 0], sizes = [8, 32], strides = [1, 1]} : vector<8x96xbf16> to vector<8x32xbf16>
    %40 = vector.extract_strided_slice %38 {offsets = [0, 32], sizes = [8, 32], strides = [1, 1]} : vector<8x96xbf16> to vector<8x32xbf16>
    %41 = vector.extract_strided_slice %38 {offsets = [0, 64], sizes = [8, 32], strides = [1, 1]} : vector<8x96xbf16> to vector<8x32xbf16>
    %42 = vector.shape_cast %39 : vector<8x32xbf16> to vector<1x8x4x8xbf16>
    %43 = tpu.transpose %42, [0, 2, 1, 3] : vector<1x8x4x8xbf16> -> vector<1x4x8x8xbf16>
    %44 = vector.shape_cast %43 : vector<1x4x8x8xbf16> to vector<4x8x8xbf16>
    %45 = vector.shape_cast %40 : vector<8x32xbf16> to vector<1x8x4x8xbf16>
    %46 = tpu.transpose %45, [0, 2, 1, 3] : vector<1x8x4x8xbf16> -> vector<1x4x8x8xbf16>
    %47 = vector.shape_cast %46 : vector<1x4x8x8xbf16> to vector<4x8x8xbf16>
    %48 = vector.shape_cast %41 : vector<8x32xbf16> to vector<1x8x4x8xbf16>
    %49 = tpu.transpose %48, [0, 2, 1, 3] : vector<1x8x4x8xbf16> -> vector<1x4x8x8xbf16>
    %50 = vector.shape_cast %49 : vector<1x4x8x8xbf16> to vector<4x8x8xbf16>
    "tpu.trace_start"() <{level = 10 : i32, message = "nqd,nkd->nqk"}> : () -> ()
    %cst_15 = arith.constant dense<0.000000e+00> : vector<4x8x8xf32>
    %51 = tpu.matmul %44, %47, %cst_15 {dimension_numbers = #tpu.dot_dimension_numbers<[2], [2], [1], [1], [0, 0, 0, 1, 1, 1], [0], [0]>} : vector<4x8x8xbf16>, vector<4x8x8xbf16>, vector<4x8x8xf32> -> vector<4x8x8xf32>
    "tpu.trace_stop"() : () -> ()
    %52 = vector.shape_cast %51 : vector<4x8x8xf32> to vector<1x4x8x8xf32>
    %53 = vector.shape_cast %9 : vector<1x1x8xf32> to vector<1x1x1x8xf32>
    %54 = vector.broadcast %53 : vector<1x1x1x8xf32> to vector<1x4x8x8xf32>
    %55 = arith.addf %52, %54 : vector<1x4x8x8xf32>
    %cst_16 = arith.constant dense<0xFF800000> : vector<1x4x8xf32>
    %56 = vector.multi_reduction <maximumf>, %55, %cst_16 [3] : vector<1x4x8x8xf32> to vector<1x4x8xf32>
    %57 = vector.shape_cast %56 : vector<1x4x8xf32> to vector<1x4x8x1xf32>
    %58 = vector.broadcast %57 : vector<1x4x8x1xf32> to vector<1x4x8x8xf32>
    %59 = arith.subf %55, %58 : vector<1x4x8x8xf32>
    %60 = math.exp %59 : vector<1x4x8x8xf32>
    %cst_17 = arith.constant dense<0.000000e+00> : vector<1x4x8xf32>
    %61 = vector.multi_reduction <add>, %60, %cst_17 [3] : vector<1x4x8x8xf32> to vector<1x4x8xf32>
    %62 = vector.shape_cast %61 : vector<1x4x8xf32> to vector<1x4x8x1xf32>
    %63 = arith.truncf %60 : vector<1x4x8x8xf32> to vector<1x4x8x8xbf16>
    %64 = vector.shape_cast %63 : vector<1x4x8x8xbf16> to vector<4x8x8xbf16>
    "tpu.trace_start"() <{level = 10 : i32, message = "nqk,nkd->nqd"}> : () -> ()
    %cst_18 = arith.constant dense<0.000000e+00> : vector<4x8x8xf32>
    %65 = tpu.matmul %64, %50, %cst_18 {dimension_numbers = #tpu.dot_dimension_numbers<[2], [1], [1], [2], [0, 0, 0, 1, 1, 2], [0], [0]>} : vector<4x8x8xbf16>, vector<4x8x8xbf16>, vector<4x8x8xf32> -> vector<4x8x8xf32>
    "tpu.trace_stop"() : () -> ()
    %66 = vector.shape_cast %62 : vector<1x4x8x1xf32> to vector<4x8x1xf32>
    %67 = tpu.reciprocal %66 {approx = true} : vector<4x8x1xf32> -> vector<4x8x1xf32>
    %68 = vector.broadcast %67 : vector<4x8x1xf32> to vector<4x8x8xf32>
    %69 = arith.mulf %65, %68 : vector<4x8x8xf32>
    %70 = arith.truncf %69 : vector<4x8x8xf32> to vector<4x8x8xbf16>
    %71 = vector.shape_cast %70 : vector<4x8x8xbf16> to vector<1x4x8x8xbf16>
    %72 = tpu.transpose %71, [0, 2, 1, 3] : vector<1x4x8x8xbf16> -> vector<1x8x4x8xbf16>
    %73 = vector.shape_cast %72 : vector<1x8x4x8xbf16> to vector<8x32xbf16>
    %c0_19 = arith.constant 0 : index
    %c0_20 = arith.constant 0 : index
    %74 = vector.load %arg5[%c0_19, %c0_20] : memref<32x32xbf16, #tpu.memory_space<vmem>>, vector<32x32xbf16>
    %cst_21 = arith.constant dense<0.000000e+00> : vector<8x32xf32>
    %75 = tpu.matmul %73, %74, %cst_21 {dimension_numbers = #tpu.dot_dimension_numbers<[1], [0], [0], [1], [0, 0, 1, 1], [], []>} : vector<8x32xbf16>, vector<32x32xbf16>, vector<8x32xf32> -> vector<8x32xf32>
    %76 = vector.broadcast %3 : vector<1x32xf32> to vector<8x32xf32>
    %77 = arith.addf %75, %76 : vector<8x32xf32>
    %78 = arith.addf %1, %77 : vector<8x32xf32>
    %cst_22 = arith.constant dense<0.000000e+00> : vector<8xf32>
    %79 = vector.multi_reduction <add>, %78, %cst_22 [1] : vector<8x32xf32> to vector<8xf32>
    %80 = vector.shape_cast %79 : vector<8xf32> to vector<8x1xf32>
    %cst_23 = arith.constant 3.200000e+01 : f32
    %81 = vector.broadcast %cst_23 : f32 to vector<8x1xf32>
    %82 = arith.divf %80, %81 : vector<8x1xf32>
    %83 = vector.broadcast %82 : vector<8x1xf32> to vector<8x32xf32>
    %84 = arith.subf %78, %83 : vector<8x32xf32>
    %85 = arith.mulf %84, %84 : vector<8x32xf32>
    %cst_24 = arith.constant dense<0.000000e+00> : vector<8xf32>
    %86 = vector.multi_reduction <add>, %85, %cst_24 [1] : vector<8x32xf32> to vector<8xf32>
    %87 = vector.shape_cast %86 : vector<8xf32> to vector<8x1xf32>
    %cst_25 = arith.constant 3.200000e+01 : f32
    %88 = vector.broadcast %cst_25 : f32 to vector<8x1xf32>
    %89 = arith.divf %87, %88 : vector<8x1xf32>
    %90 = vector.broadcast %82 : vector<8x1xf32> to vector<8x32xf32>
    %91 = arith.subf %78, %90 : vector<8x32xf32>
    %cst_26 = arith.constant 9.99999997E-7 : f32
    %92 = vector.broadcast %cst_26 : f32 to vector<8x1xf32>
    %93 = arith.addf %89, %92 : vector<8x1xf32>
    %94 = math.rsqrt %93 : vector<8x1xf32>
    %95 = vector.broadcast %94 : vector<8x1xf32> to vector<8x32xf32>
    %96 = arith.mulf %91, %95 : vector<8x32xf32>
    %97 = vector.broadcast %7 : vector<1x32xf32> to vector<8x32xf32>
    %98 = arith.mulf %96, %97 : vector<8x32xf32>
    %99 = vector.broadcast %8 : vector<1x32xf32> to vector<8x32xf32>
    %100 = arith.addf %98, %99 : vector<8x32xf32>
    %101 = arith.truncf %100 : vector<8x32xf32> to vector<8x32xbf16>
    %c0_27 = arith.constant 0 : index
    %c0_28 = arith.constant 0 : index
    %102 = vector.load %arg6[%c0_27, %c0_28] : memref<32x128xbf16, #tpu.memory_space<vmem>>, vector<32x128xbf16>
    %cst_29 = arith.constant dense<0.000000e+00> : vector<8x128xf32>
    %103 = tpu.matmul %101, %102, %cst_29 {dimension_numbers = #tpu.dot_dimension_numbers<[1], [0], [0], [1], [0, 0, 1, 1], [], []>} : vector<8x32xbf16>, vector<32x128xbf16>, vector<8x128xf32> -> vector<8x128xf32>
    %c0_30 = arith.constant 0 : index
    %c0_31 = arith.constant 0 : index
    %104 = vector.load %arg7[%c0_30, %c0_31] : memref<1x128xf32, #tpu.memory_space<vmem>>, vector<1x128xf32>
    %105 = vector.broadcast %104 : vector<1x128xf32> to vector<8x128xf32>
    %106 = arith.addf %103, %105 : vector<8x128xf32>
    %cst_32 = arith.constant 5.000000e-01 : f32
    %107 = vector.broadcast %cst_32 : f32 to vector<8x128xf32>
    %108 = arith.mulf %107, %106 : vector<8x128xf32>
    %cst_33 = arith.constant 4.471500e-02 : f32
    %109 = vector.broadcast %cst_33 : f32 to vector<8x128xf32>
    %110 = arith.mulf %109, %106 : vector<8x128xf32>
    %111 = arith.mulf %110, %106 : vector<8x128xf32>
    %112 = arith.mulf %111, %106 : vector<8x128xf32>
    %113 = arith.addf %106, %112 : vector<8x128xf32>
    %cst_34 = arith.constant 0.797884583 : f32
    %114 = vector.broadcast %cst_34 : f32 to vector<8x128xf32>
    %115 = arith.mulf %114, %113 : vector<8x128xf32>
    %116 = math.tanh %115 : vector<8x128xf32>
    %cst_35 = arith.constant 1.000000e+00 : f32
    %117 = vector.broadcast %cst_35 : f32 to vector<8x128xf32>
    %118 = arith.addf %117, %116 : vector<8x128xf32>
    %119 = arith.mulf %108, %118 : vector<8x128xf32>
    %120 = arith.truncf %119 : vector<8x128xf32> to vector<8x128xbf16>
    %c0_36 = arith.constant 0 : index
    %c0_37 = arith.constant 0 : index
    %121 = vector.load %arg8[%c0_36, %c0_37] : memref<128x32xbf16, #tpu.memory_space<vmem>>, vector<128x32xbf16>
    %cst_38 = arith.constant dense<0.000000e+00> : vector<8x32xf32>
    %122 = tpu.matmul %120, %121, %cst_38 {dimension_numbers = #tpu.dot_dimension_numbers<[1], [0], [0], [1], [0, 0, 1, 1], [], []>} : vector<8x128xbf16>, vector<128x32xbf16>, vector<8x32xf32> -> vector<8x32xf32>
    %123 = vector.broadcast %4 : vector<1x32xf32> to vector<8x32xf32>
    %124 = arith.addf %122, %123 : vector<8x32xf32>
    %125 = arith.addf %78, %124 : vector<8x32xf32>
    %126 = arith.truncf %125 : vector<8x32xf32> to vector<8x32xbf16>
    %c0_39 = arith.constant 0 : index
    %c0_40 = arith.constant 0 : index
    %127 = vector.load %arg10[%c0_39, %c0_40] : memref<8x32xbf16, #tpu.memory_space<vmem>>, vector<8x32xbf16>
    tpu.vector_store %arg10[%c0_39, %c0_40], %126 {strides = array<i32>} : memref<8x32xbf16, #tpu.memory_space<vmem>>, vector<8x32xbf16>,
    return
  }
  func.func @transform_0(%arg0: i32) -> (i32, i32) {
    %c0_i32 = arith.constant 0 : i32
    %c0_i32_0 = arith.constant 0 : i32
    return %arg0, %c0_i32 : i32, i32
  }
  func.func @transform_1(%arg0: i32) -> (i32, i32, i32) {
    %c0_i32 = arith.constant 0 : i32
    %c0_i32_0 = arith.constant 0 : i32
    %c0_i32_1 = arith.constant 0 : i32
    return %arg0, %c0_i32, %c0_i32_0 : i32, i32, i32
  }
  func.func @transform_2(%arg0: i32) -> (i32, i32) {
    %c0_i32 = arith.constant 0 : i32
    %c0_i32_0 = arith.constant 0 : i32
    %c0_i32_1 = arith.constant 0 : i32
    return %c0_i32, %c0_i32_0 : i32, i32
  }
  func.func @transform_3(%arg0: i32) -> (i32, i32) {
    %c0_i32 = arith.constant 0 : i32
    %c0_i32_0 = arith.constant 0 : i32
    %c0_i32_1 = arith.constant 0 : i32
    return %c0_i32, %c0_i32_0 : i32, i32
  }
  func.func @transform_4(%arg0: i32) -> (i32, i32) {
    %c0_i32 = arith.constant 0 : i32
    %c0_i32_0 = arith.constant 0 : i32
    %c0_i32_1 = arith.constant 0 : i32
    return %c0_i32, %c0_i32_0 : i32, i32
  }
  func.func @transform_5(%arg0: i32) -> (i32, i32) {
    %c0_i32 = arith.constant 0 : i32
    %c0_i32_0 = arith.constant 0 : i32
    %c0_i32_1 = arith.constant 0 : i32
    return %c0_i32, %c0_i32_0 : i32, i32
  }
  func.func @transform_6(%arg0: i32) -> (i32, i32) {
    %c0_i32 = arith.constant 0 : i32
    %c0_i32_0 = arith.constant 0 : i32
    %c0_i32_1 = arith.constant 0 : i32
    return %c0_i32, %c0_i32_0 : i32, i32
  }
  func.func @transform_7(%arg0: i32) -> (i32, i32) {
    %c0_i32 = arith.constant 0 : i32
    %c0_i32_0 = arith.constant 0 : i32
    %c0_i32_1 = arith.constant 0 : i32
    return %c0_i32, %c0_i32_0 : i32, i32
  }
  func.func @transform_8(%arg0: i32) -> (i32, i32) {
    %c0_i32 = arith.constant 0 : i32
    %c0_i32_0 = arith.constant 0 : i32
    %c0_i32_1 = arith.constant 0 : i32
    return %c0_i32, %c0_i32_0 : i32, i32
  }
  func.func @transform_9(%arg0: i32) -> (i32, i32) {
    %c0_i32 = arith.constant 0 : i32
    %c0_i32_0 = arith.constant 0 : i32
    return %arg0, %c0_i32 : i32, i32
  }
}

</mosaic_0001>

<llo_original>
// kernel: cbit_forward.5
$region0: #{cbit_forward.5}
  #allocation0 [shape = 'u32[]', space=smem, size = 0x4, offset = 0x4, fixed_abs, tag = 'smem constant byte address 0x4 - core index']
  #allocation1 [shape = 'u32[72,128]{1,0:T(1,128)}', space=vmem, size = 0x9000, scoped, tag = 'internal scratch']
  %s0 = inlined_call_operand.vmem [shape: bf16[16,32], index: 0, kind: input, shape index: {}]
  %s1 = inlined_call_operand.vmem [shape: bf16[32,128], index: 1, kind: input, shape index: {}]
  %s2 = inlined_call_operand.vmem [shape: f32[1,128], index: 2, kind: input, shape index: {}]
  %s3 = inlined_call_operand.hbm [shape: f32[16,128], index: 3, kind: output, shape index: {}]
  %s4 = sld [smem:[#allocation0]]
  $region22: #{cbit_forward.5} parent=0
    _
  %s6 = ssub.s32 1, %s4
  %s7 = scalar_select 0, %s6, %s4
  $region1: #{cbit_forward.5} parent=0
    #allocation2 [shape = 'u8[8192]{0}', space=vmem, size = 0x2000, scoped, tag = 'output window, operand 0, single buffered']
    #allocation3 [shape = 's32[1]{0}', space=sflag, size = 0x4, scoped, tag = 'scoped memory for cbit_forward.5']
    %8 = vsyncpa [#allocation3], 0
    // Predicated region
    $region2: #{cbit_forward.5} parent=1 // pred_check
      _
    $region3: #{cbit_forward.5} parent=1 // pred_check_branch
      %10 = sbr.rel (0) target = $region5
    $region4: #{cbit_forward.5} parent=1 // pred_region
      _
    $region5: #{cbit_forward.5} parent=1 // pred_fallthru
      _
    // Predicated region
    $region6: #{cbit_forward.5} parent=1 // pred_check
      _
    $region7: #{cbit_forward.5} parent=1 // pred_check_branch
      %12 = sbr.rel (0) target = $region9
    $region8: #{cbit_forward.5} parent=1 // pred_region
      _
    $region9: #{cbit_forward.5} parent=1 // pred_fallthru
      _
    // Predicated region
    $region10: #{cbit_forward.5} parent=1 // pred_check
      _
    $region11: #{cbit_forward.5} parent=1 // pred_check_branch
      %14 = sbr.rel (0) target = $region13
    $region12: #{cbit_forward.5} parent=1 // pred_region
      _
    $region13: #{cbit_forward.5} parent=1 // pred_fallthru
      _
    %v16 = vld [vmem:[%s0] sm:$0xf]
    %v17 = vld [vmem:[%s0 + $0x4] sm:$0xf]
    %v18 = vld [vmem:[%s1] sm:$0xf]
    %v19 = vld [vmem:[%s1 + $0x4] sm:$0xf]
    %v20 = vld [vmem:[%s1 + $0x8] sm:$0xf]
    %v21 = vld [vmem:[%s1 + $0xc] sm:$0xf]
    %v22 = vld [vmem:[%s2] sm:$0x1]
    %v24 = vperm.slane %v22, 0
    %v28 = vunpack.c.l.b16 %v16
    %v29 = vunpack.c.l.b16 %v17
    %v30 = vpack.c.b16 %v29, %v28
    %v35 = vunpack.c.l.b16 %v18
    %v36 = vunpack.c.l.b16 %v19
    %v37 = vunpack.c.l.b16 %v20
    %v38 = vunpack.c.l.b16 %v21
    %v39 = vpack.c.b16 %v36, %v35
    %v40 = vpack.c.b16 %v38, %v37
    %vm43 = vcmask 261120
    %v45 = vsel %vm43, %v30, 0
    %47 = vmatpush.bf16.msra.mxu0 0
    %48 = vmatpush.bf16.msra.mxu0 0
    %49 = vmatpush.bf16.msra.mxu0 0
    %50 = vmatpush.bf16.msra.mxu0 0
    %51 = vmatpush.bf16.msra.mxu0 0
    %52 = vmatpush.bf16.msra.mxu0 0
    %53 = vmatpush.bf16.msra.mxu0 %v40
    %54 = vmatpush.bf16.msra.mxu0 %v39
    %55 = vmatmul.bf16.gmra.mxu0 %v45
    %v56 = vpop.f32.mrf.mxu0
    %v57 = vadd.f32 %v24, %v56
    %v58 = vpop.f32.mrf.mxu0
    %v59 = vadd.f32 %v24, %v58
    %60 = vdwg.mxu0
    %61 = vst [vmem:[#allocation2] sm:$0xff] %v57
    %62 = vst [vmem:[#allocation2 + $0x8] sm:$0xff] %v59
    // Predicated region
    $region14: #{cbit_forward.5} parent=1 // pred_check
      _
    $region15: #{cbit_forward.5} parent=1 // pred_check_branch
      %64 = sbr.rel (0) target = $region17
    $region16: #{cbit_forward.5} parent=1 // pred_region
      %66 = vsyncadd [#allocation3], 0
      %s67 = sshll.u32 [#allocation2], 4
      %s68 = int_to_ptr.vmem [resolvable:$true] %s67
      %s69 = sshll.u32 %s3, 4
      %s70 = int_to_ptr.hbm [resolvable:$true] %s69
      %75 = dma.vmem_to_hbm [thread:$0]  %s68, 256, %s70, [#allocation3], 128, 128, 8
    $region17: #{cbit_forward.5} parent=1 // pred_fallthru
      _
    // Predicated region
    $region18: #{cbit_forward.5} parent=1 // pred_check
      _
    $region19: #{cbit_forward.5} parent=1 // pred_check_branch
      %77 = sbr.rel (0) target = $region21
    $region20: #{cbit_forward.5} parent=1 // pred_region
      %79 = dma.done [#allocation3], 256
    $region21: #{cbit_forward.5} parent=1 // pred_fallthru
      _
    %80 = vsyncpa [#allocation3], 1

// kernel: cbit_forward.3
$region0: #{cbit_forward.3}
  #allocation0 [shape = 'u32[]', space=smem, size = 0x4, offset = 0x4, fixed_abs, tag = 'smem constant byte address 0x4 - core index']
  #allocation1 [shape = 'u32[72,128]{1,0:T(1,128)}', space=vmem, size = 0x9000, scoped, tag = 'internal scratch']
  %s0 = inlined_call_operand.vmem [shape: bf16[16,32], index: 0, kind: input, shape index: {}]
  %s1 = inlined_call_operand.vmem [shape: f32[2,1,8], index: 1, kind: input, shape index: {}]
  %s2 = inlined_call_operand.vmem [shape: bf16[32,96], index: 2, kind: input, shape index: {}]
  %s3 = inlined_call_operand.vmem [shape: f32[1,96], index: 3, kind: input, shape index: {}]
  %s4 = inlined_call_operand.vmem [shape: bf16[32,32], index: 4, kind: input, shape index: {}]
  %s5 = inlined_call_operand.vmem [shape: bf16[32,128], index: 5, kind: input, shape index: {}]
  %s6 = inlined_call_operand.vmem [shape: f32[1,128], index: 6, kind: input, shape index: {}]
  %s7 = inlined_call_operand.vmem [shape: bf16[128,32], index: 7, kind: input, shape index: {}]
  %s8 = inlined_call_operand.vmem [shape: f32[8,32], index: 8, kind: input, shape index: {}]
  %s9 = inlined_call_operand.vmem [shape: bf16[16,32], index: 9, kind: output, shape index: {}]
  %s10 = sld [smem:[#allocation0]]
  $region69: #{cbit_forward.3} parent=0
    _
  %s12 = ssub.s32 1, %s10
  %s13 = scalar_select 0, %s12, %s10
  loop: start=0, step=1, limit=4
  $region2: #{cbit_forward.3} parent=0 // loop_pre_header
    _
  $region3: #{cbit_forward.3} parent=0 // loop_header
    %s15 = sphi 0, %s19
    %p16 = scmp.ge.s32.totalorder %s15, 4
    %s25 = sphi 0, %s27
    %s28 = sphi 0, %s25
    %s29 = sphi 0, %s28
    %s45 = sphi 0, %s29
    %s51 = sphi 0, %s53
    %s54 = sphi 0, %s51
    %s55 = sphi 0, %s54
    %s71 = sphi 0, %s55
    %s75 = sphi 0, %s75
    %s77 = sphi 0, %s75
    %s78 = sphi 0, %s77
    %s92 = sphi 0, %s78
    %s96 = sphi 0, %s96
    %s98 = sphi 0, %s96
    %s99 = sphi 0, %s98
    %s113 = sphi 0, %s99
    %s117 = sphi 0, %s117
    %s119 = sphi 0, %s117
    %s120 = sphi 0, %s119
    %s134 = sphi 0, %s120
    %s138 = sphi 0, %s138
    %s140 = sphi 0, %s138
    %s141 = sphi 0, %s140
    %s155 = sphi 0, %s141
    %s159 = sphi 0, %s159
    %s161 = sphi 0, %s159
    %s162 = sphi 0, %s161
    %s176 = sphi 0, %s162
    %s180 = sphi 0, %s180
    %s182 = sphi 0, %s180
    %s183 = sphi 0, %s182
    %s197 = sphi 0, %s183
    %s201 = sphi 0, %s201
    %s203 = sphi 0, %s201
    %s204 = sphi 0, %s203
    %s218 = sphi 0, %s204
    %s224 = sphi 0, %s226
    %s227 = sphi 0, %s224
    %s228 = sphi 0, %s227
    %s244 = sphi 0, %s228
  $region4: #{cbit_forward.3} parent=0 // loop_header_branch
    %18 = sbr.rel (%p16) target = $region8
  $region5: #{cbit_forward.3} parent=0 // loop_body
    %s20 = ssub.s32 %s15, 1
    %s21 = ssub.s32 %s15, 2
    %s22 = sadd.s32 %s15, 1
    %s23 = ssub.s32 %s15, %s22
    %p24 = scmp.eq.s32.totalorder %s23, 0
    %s26 = sadd.s32 %s25, 1
    %s27 = scalar_select %p24, %s25, %s26
    %p30 = pneg %p24
    %p31 = scmp.eq.s32.totalorder %s15, 1
    %p32 = por %p30, %p31
    %p33 = scmp.ne.s32.totalorder %s25, %s28
    %p34 = scmp.eq.s32.totalorder %s15, 0
    %p35 = por %p33, %p34
    %p36 = scmp.ne.s32.totalorder %s25, %s28
    %p37 = scmp.eq.s32.totalorder %s20, 1
    %p38 = por %p36, %p37
    %p39 = scmp.ne.s32.totalorder %s28, %s29
    %p40 = scmp.eq.s32.totalorder %s20, 0
    %p41 = por %p39, %p40
    %p42 = scmp.ne.s32.totalorder %s28, %s29
    %p43 = scmp.eq.s32.totalorder %s21, 1
    %p44 = por %p42, %p43
    %p46 = scmp.ne.s32.totalorder %s29, %s45
    %p47 = scmp.eq.s32.totalorder %s21, 0
    %p48 = por %p46, %p47
    %s49 = ssub.s32 %s15, %s22
    %p50 = scmp.eq.s32.totalorder %s49, 0
    %s52 = sadd.s32 %s51, 1
    %s53 = scalar_select %p50, %s51, %s52
    %p56 = pneg %p50
    %p57 = scmp.eq.s32.totalorder %s15, 1
    %p58 = por %p56, %p57
    %p59 = scmp.ne.s32.totalorder %s51, %s54
    %p60 = scmp.eq.s32.totalorder %s15, 0
    %p61 = por %p59, %p60
    %p62 = scmp.ne.s32.totalorder %s51, %s54
    %p63 = scmp.eq.s32.totalorder %s20, 1
    %p64 = por %p62, %p63
    %p65 = scmp.ne.s32.totalorder %s54, %s55
    %p66 = scmp.eq.s32.totalorder %s20, 0
    %p67 = por %p65, %p66
    %p68 = scmp.ne.s32.totalorder %s54, %s55
    %p69 = scmp.eq.s32.totalorder %s21, 1
    %p70 = por %p68, %p69
    %p72 = scmp.ne.s32.totalorder %s55, %s71
    %p73 = scmp.eq.s32.totalorder %s21, 0
    %p74 = por %p72, %p73
    %s76 = sadd.s32 %s75, 1
    %p79 = scmp.eq.s32.totalorder %s15, 1
    %p80 = scmp.ne.s32.totalorder %s75, %s77
    %p81 = scmp.eq.s32.totalorder %s15, 0
    %p82 = por %p80, %p81
    %p83 = scmp.ne.s32.totalorder %s75, %s77
    %p84 = scmp.eq.s32.totalorder %s20, 1
    %p85 = por %p83, %p84
    %p86 = scmp.ne.s32.totalorder %s77, %s78
    %p87 = scmp.eq.s32.totalorder %s20, 0
    %p88 = por %p86, %p87
    %p89 = scmp.ne.s32.totalorder %s77, %s78
    %p90 = scmp.eq.s32.totalorder %s21, 1
    %p91 = por %p89, %p90
    %p93 = scmp.ne.s32.totalorder %s78, %s92
    %p94 = scmp.eq.s32.totalorder %s21, 0
    %p95 = por %p93, %p94
    %s97 = sadd.s32 %s96, 1
    %p100 = scmp.eq.s32.totalorder %s15, 1
    %p101 = scmp.ne.s32.totalorder %s96, %s98
    %p102 = scmp.eq.s32.totalorder %s15, 0
    %p103 = por %p101, %p102
    %p104 = scmp.ne.s32.totalorder %s96, %s98
    %p105 = scmp.eq.s32.totalorder %s20, 1
    %p106 = por %p104, %p105
    %p107 = scmp.ne.s32.totalorder %s98, %s99
    %p108 = scmp.eq.s32.totalorder %s20, 0
    %p109 = por %p107, %p108
    %p110 = scmp.ne.s32.totalorder %s98, %s99
    %p111 = scmp.eq.s32.totalorder %s21, 1
    %p112 = por %p110, %p111
    %p114 = scmp.ne.s32.totalorder %s99, %s113
    %p115 = scmp.eq.s32.totalorder %s21, 0
    %p116 = por %p114, %p115
    %s118 = sadd.s32 %s117, 1
    %p121 = scmp.eq.s32.totalorder %s15, 1
    %p122 = scmp.ne.s32.totalorder %s117, %s119
    %p123 = scmp.eq.s32.totalorder %s15, 0
    %p124 = por %p122, %p123
    %p125 = scmp.ne.s32.totalorder %s117, %s119
    %p126 = scmp.eq.s32.totalorder %s20, 1
    %p127 = por %p125, %p126
    %p128 = scmp.ne.s32.totalorder %s119, %s120
    %p129 = scmp.eq.s32.totalorder %s20, 0
    %p130 = por %p128, %p129
    %p131 = scmp.ne.s32.totalorder %s119, %s120
    %p132 = scmp.eq.s32.totalorder %s21, 1
    %p133 = por %p131, %p132
    %p135 = scmp.ne.s32.totalorder %s120, %s134
    %p136 = scmp.eq.s32.totalorder %s21, 0
    %p137 = por %p135, %p136
    %s139 = sadd.s32 %s138, 1
    %p142 = scmp.eq.s32.totalorder %s15, 1
    %p143 = scmp.ne.s32.totalorder %s138, %s140
    %p144 = scmp.eq.s32.totalorder %s15, 0
    %p145 = por %p143, %p144
    %p146 = scmp.ne.s32.totalorder %s138, %s140
    %p147 = scmp.eq.s32.totalorder %s20, 1
    %p148 = por %p146, %p147
    %p149 = scmp.ne.s32.totalorder %s140, %s141
    %p150 = scmp.eq.s32.totalorder %s20, 0
    %p151 = por %p149, %p150
    %p152 = scmp.ne.s32.totalorder %s140, %s141
    %p153 = scmp.eq.s32.totalorder %s21, 1
    %p154 = por %p152, %p153
    %p156 = scmp.ne.s32.totalorder %s141, %s155
    %p157 = scmp.eq.s32.totalorder %s21, 0
    %p158 = por %p156, %p157
    %s160 = sadd.s32 %s159, 1
    %p163 = scmp.eq.s32.totalorder %s15, 1
    %p164 = scmp.ne.s32.totalorder %s159, %s161
    %p165 = scmp.eq.s32.totalorder %s15, 0
    %p166 = por %p164, %p165
    %p167 = scmp.ne.s32.totalorder %s159, %s161
    %p168 = scmp.eq.s32.totalorder %s20, 1
    %p169 = por %p167, %p168
    %p170 = scmp.ne.s32.totalorder %s161, %s162
    %p171 = scmp.eq.s32.totalorder %s20, 0
    %p172 = por %p170, %p171
    %p173 = scmp.ne.s32.totalorder %s161, %s162
    %p174 = scmp.eq.s32.totalorder %s21, 1
    %p175 = por %p173, %p174
    %p177 = scmp.ne.s32.totalorder %s162, %s176
    %p178 = scmp.eq.s32.totalorder %s21, 0
    %p179 = por %p177, %p178
    %s181 = sadd.s32 %s180, 1
    %p184 = scmp.eq.s32.totalorder %s15, 1
    %p185 = scmp.ne.s32.totalorder %s180, %s182
    %p186 = scmp.eq.s32.totalorder %s15, 0
    %p187 = por %p185, %p186
    %p188 = scmp.ne.s32.totalorder %s180, %s182
    %p189 = scmp.eq.s32.totalorder %s20, 1
    %p190 = por %p188, %p189
    %p191 = scmp.ne.s32.totalorder %s182, %s183
    %p192 = scmp.eq.s32.totalorder %s20, 0
    %p193 = por %p191, %p192
    %p194 = scmp.ne.s32.totalorder %s182, %s183
    %p195 = scmp.eq.s32.totalorder %s21, 1
    %p196 = por %p194, %p195
    %p198 = scmp.ne.s32.totalorder %s183, %s197
    %p199 = scmp.eq.s32.totalorder %s21, 0
    %p200 = por %p198, %p199
    %s202 = sadd.s32 %s201, 1
    %p205 = scmp.eq.s32.totalorder %s15, 1
    %p206 = scmp.ne.s32.totalorder %s201, %s203
    %p207 = scmp.eq.s32.totalorder %s15, 0
    %p208 = por %p206, %p207
    %p209 = scmp.ne.s32.totalorder %s201, %s203
    %p210 = scmp.eq.s32.totalorder %s20, 1
    %p211 = por %p209, %p210
    %p212 = scmp.ne.s32.totalorder %s203, %s204
    %p213 = scmp.eq.s32.totalorder %s20, 0
    %p214 = por %p212, %p213
    %p215 = scmp.ne.s32.totalorder %s203, %s204
    %p216 = scmp.eq.s32.totalorder %s21, 1
    %p217 = por %p215, %p216
    %p219 = scmp.ne.s32.totalorder %s204, %s218
    %p220 = scmp.eq.s32.totalorder %s21, 0
    %p221 = por %p219, %p220
    %s222 = ssub.s32 %s15, %s22
    %p223 = scmp.eq.s32.totalorder %s222, 0
    %s225 = sadd.s32 %s224, 1
    %s226 = scalar_select %p223, %s224, %s225
    %p229 = pneg %p223
    %p230 = scmp.eq.s32.totalorder %s15, 1
    %p231 = por %p229, %p230
    %p232 = scmp.ne.s32.totalorder %s224, %s227
    %p233 = scmp.eq.s32.totalorder %s15, 0
    %p234 = por %p232, %p233
    %p235 = scmp.ne.s32.totalorder %s224, %s227
    %p236 = scmp.eq.s32.totalorder %s20, 1
    %p237 = por %p235, %p236
    %p238 = scmp.ne.s32.totalorder %s227, %s228
    %p239 = scmp.eq.s32.totalorder %s20, 0
    %p240 = por %p238, %p239
    %p241 = scmp.ne.s32.totalorder %s227, %s228
    %p242 = scmp.eq.s32.totalorder %s21, 1
    %p243 = por %p241, %p242
    %p245 = scmp.ne.s32.totalorder %s228, %s244
    %p246 = scmp.eq.s32.totalorder %s21, 0
    %p247 = por %p245, %p246
    %p248 = scmp.le.s32.totalorder 1, %s15
    %p249 = scmp.lt.s32.totalorder %s15, 3
    %p250 = pnand %p248, %p249
    %p251 = pneg %p250
    // Predicated region
    $region9: #{cbit_forward.3} parent=5 // pred_check
      _
    $region10: #{cbit_forward.3} parent=5 // pred_check_branch
      %253 = sbr.rel (%p250) target = $region12
    $region11: #{cbit_forward.3} parent=5 // pred_region
      %s254 = ssub.s32 %s15, 1
      // Predicated region
      $region13: #{cbit_forward.3} parent=11 // pred_check
        %p255 = pneg %p88
      $region14: #{cbit_forward.3} parent=11 // pred_check_branch
        %257 = sbr.rel (%p255) target = $region16
      $region15: #{cbit_forward.3} parent=11 // pred_region
        _
      $region16: #{cbit_forward.3} parent=11 // pred_fallthru
        _
      // Predicated region
      $region17: #{cbit_forward.3} parent=11 // pred_check
        %p258 = pneg %p109
      $region18: #{cbit_forward.3} parent=11 // pred_check_branch
        %260 = sbr.rel (%p258) target = $region20
      $region19: #{cbit_forward.3} parent=11 // pred_region
        _
      $region20: #{cbit_forward.3} parent=11 // pred_fallthru
        _
      // Predicated region
      $region21: #{cbit_forward.3} parent=11 // pred_check
        %p261 = pneg %p130
      $region22: #{cbit_forward.3} parent=11 // pred_check_branch
        %263 = sbr.rel (%p261) target = $region24
      $region23: #{cbit_forward.3} parent=11 // pred_region
        _
      $region24: #{cbit_forward.3} parent=11 // pred_fallthru
        _
      // Predicated region
      $region25: #{cbit_forward.3} parent=11 // pred_check
        %p264 = pneg %p151
      $region26: #{cbit_forward.3} parent=11 // pred_check_branch
        %266 = sbr.rel (%p264) target = $region28
      $region27: #{cbit_forward.3} parent=11 // pred_region
        _
      $region28: #{cbit_forward.3} parent=11 // pred_fallthru
        _
      // Predicated region
      $region29: #{cbit_forward.3} parent=11 // pred_check
        %p267 = pneg %p172
      $region30: #{cbit_forward.3} parent=11 // pred_check_branch
        %269 = sbr.rel (%p267) target = $region32
      $region31: #{cbit_forward.3} parent=11 // pred_region
        _
      $region32: #{cbit_forward.3} parent=11 // pred_fallthru
        _
      // Predicated region
      $region33: #{cbit_forward.3} parent=11 // pred_check
        %p270 = pneg %p193
      $region34: #{cbit_forward.3} parent=11 // pred_check_branch
        %272 = sbr.rel (%p270) target = $region36
      $region35: #{cbit_forward.3} parent=11 // pred_region
        _
      $region36: #{cbit_forward.3} parent=11 // pred_fallthru
        _
      // Predicated region
      $region37: #{cbit_forward.3} parent=11 // pred_check
        %p273 = pneg %p214
      $region38: #{cbit_forward.3} parent=11 // pred_check_branch
        %275 = sbr.rel (%p273) target = $region40
      $region39: #{cbit_forward.3} parent=11 // pred_region
        _
      $region40: #{cbit_forward.3} parent=11 // pred_fallthru
        _
    $region12: #{cbit_forward.3} parent=5 // pred_fallthru
      _
    %p276 = scmp.lt.s32.totalorder %s15, 2
    // Predicated region
    $region41: #{cbit_forward.3} parent=5 // pred_check
      %p277 = pneg %p276
    $region42: #{cbit_forward.3} parent=5 // pred_check_branch
      %279 = sbr.rel (%p277) target = $region44
    $region43: #{cbit_forward.3} parent=5 // pred_region
      // Predicated region
      $region45: #{cbit_forward.3} parent=43 // pred_check
        %p280 = pneg %p35
      $region46: #{cbit_forward.3} parent=43 // pred_check_branch
        %282 = sbr.rel (%p280) target = $region48
      $region47: #{cbit_forward.3} parent=43 // pred_region
        %p283 = scmp.lt.s32.totalorder %s15, 1
        %s284 = scalar_select %p283, %s15, 1
        %s285 = smul.addr %s284, 4
        %s286 = scalar_lea.vmem %s0, %s285
      $region48: #{cbit_forward.3} parent=43 // pred_fallthru
        _
      // Predicated region
      $region49: #{cbit_forward.3} parent=43 // pred_check
        %p287 = pneg %p61
      $region50: #{cbit_forward.3} parent=43 // pred_check_branch
        %289 = sbr.rel (%p287) target = $region52
      $region51: #{cbit_forward.3} parent=43 // pred_region
        %p290 = scmp.lt.s32.totalorder %s15, 1
        %s291 = scalar_select %p290, %s15, 1
        %s292 = scalar_lea.vmem %s1, %s291
      $region52: #{cbit_forward.3} parent=43 // pred_fallthru
        _
    $region44: #{cbit_forward.3} parent=5 // pred_fallthru
      _
    %p293 = scmp.le.s32.totalorder 1, %s15
    %p294 = scmp.lt.s32.totalorder %s15, 3
    %p295 = pnand %p293, %p294
    %p296 = pneg %p295
    // Predicated region
    $region53: #{cbit_forward.3} parent=5 // pred_check
      _
    $region54: #{cbit_forward.3} parent=5 // pred_check_branch
      %298 = sbr.rel (%p295) target = $region56
    $region55: #{cbit_forward.3} parent=5 // pred_region
      %s299 = ssub.s32 %s15, 1
      %p300 = scmp.lt.s32.totalorder %s20, 1
      %s301 = scalar_select %p300, %s20, 1
      %s302 = smul.addr %s301, 4
      %s303 = scalar_lea.vmem %s0, %s302
      %p304 = pneg %p41
      %p305 = pneg %p38
      %p306 = scmp.lt.s32.totalorder %s20, 1
      %s307 = scalar_select %p306, %s20, 1
      %s308 = scalar_lea.vmem %s1, %s307
      %p309 = pneg %p67
      %p310 = pneg %p64
      %p311 = pneg %p88
      %p312 = pneg %p85
      %p313 = pneg %p109
      %p314 = pneg %p106
      %p315 = pneg %p130
      %p316 = pneg %p127
      %p317 = pneg %p151
      %p318 = pneg %p148
      %p319 = pneg %p172
      %p320 = pneg %p169
      %p321 = pneg %p193
      %p322 = pneg %p190
      %p323 = pneg %p214
      %p324 = pneg %p211
      %p325 = pneg %p240
      %p326 = pneg %p237
      %p327 = scmp.lt.s32.totalorder %s20, 1
      %s328 = scalar_select %p327, %s20, 1
      %s329 = smul.addr %s328, 4
      %s330 = scalar_lea.vmem %s9, %s329
      %p331 = scmp.lt.s32.totalorder %s20, 1
      %s332 = scalar_select %p331, %s20, 1
      %s333 = smul.addr %s332, 4
      %s334 = scalar_lea.vmem %s0, %s333
      %p335 = scmp.lt.s32.totalorder %s20, 1
      %s336 = scalar_select %p335, %s20, 1
      %s337 = scalar_lea.vmem %s1, %s336
      %p338 = scmp.lt.s32.totalorder %s20, 1
      %s339 = scalar_select %p338, %s20, 1
      %s340 = smul.addr %s339, 4
      %s341 = scalar_lea.vmem %s9, %s340
      %v343 = vld [vmem:[%s334] sm:$0xf]
      %v344 = vunpack.c.l.bf16 %v343
      %v345 = vld [vmem:[%s8] sm:$0xff]
      %v346 = vld [vmem:[%s337] sm:$0x1]
      %vm347 = vcmask 261120
      %v348 = vsel %vm347, %v344, 0.0
      %349 = vadd.xlane.f32.xlu0 %v348
      %v350 = vpop.xlane.xlu0 %349
      %v351 = vrcp.pop 32.0
      %v352 = vmul.f32 32.0, %v351
      %v353 = vsub.f32 1.0, %v352
      %v354 = vmul.f32 %v351, %v353
      %v355 = vadd.f32 %v351, %v354
      %vm356 = vweird.f32 %v351
      %v357 = vsel %vm356, %v351, %v355
      %v358 = vmul.f32 %v350, %v357
      %v359 = vsub.f32 %v344, %v358
      %v360 = vmul.f32 %v359, %v359
      %v361 = vsel %vm347, %v360, 0.0
      %362 = vadd.xlane.f32.xlu0 %v361
      %v363 = vpop.xlane.xlu0 %362
      %v364 = vmul.f32 %v363, %v357
      %v365 = vadd.f32 %v364, 1e-06
      %v366 = vrsqrt.pop %v365
      %v367 = vmul.f32 %v366, %v365
      %v368 = vmul.f32 %v367, %v366
      %v369 = vmul.f32 0.5, %v368
      %v370 = vsub.f32 1.5, %v369
      %v371 = vmul.f32 %v366, %v370
      %vm372 = vweird.f32 %v365
      %vm373 = vweird.f32 %v366
      %vm374 = vmor %vm372, %vm373
      %v375 = vsel %vm374, %v366, %v371
      %v376 = vmul.f32 %v359, %v375
      %v377 = vperm.slane %v345, 2
      %v378 = vmul.f32 %v376, %v377
      %v379 = vperm.slane %v345, 3
      %v380 = vadd.f32 %v378, %v379
      %v381 = vpack.c.bf16 %v380, %v380
      %v382 = vld [vmem:[%s2] sm:$0xf]
      %v383 = vld [vmem:[%s2 + $0x4] sm:$0xf]
      %v384 = vld [vmem:[%s2 + $0x8] sm:$0xf]
      %v385 = vld [vmem:[%s2 + $0xc] sm:$0xf]
      %v386 = vld [vmem:[%s3] sm:$0x1]
      %v388 = vperm.slane %v386, 0
      %v394 = vunpack.c.l.b16 %v382
      %v395 = vunpack.c.l.b16 %v383
      %v396 = vunpack.c.l.b16 %v384
      %v397 = vunpack.c.l.b16 %v385
      %v398 = vpack.c.b16 %v395, %v394
      %v399 = vpack.c.b16 %v397, %v396
      %v403 = vsel %vm347, %v381, 0
      %405 = vmatpush.bf16.msra.mxu0 0
      %406 = vmatpush.bf16.msra.mxu0 0
      %407 = vmatpush.bf16.msra.mxu0 0
      %408 = vmatpush.bf16.msra.mxu0 0
      %409 = vmatpush.bf16.msra.mxu0 0
      %410 = vmatpush.bf16.msra.mxu0 0
      %411 = vmatpush.bf16.msra.mxu0 %v399
      %412 = vmatpush.bf16.msra.mxu0 %v398
      %413 = vmatmul.bf16.gmra.mxu0 %v403
      %v414 = vpop.f32.mrf.mxu0
      %v415 = vadd.f32 %v388, %v414
      %v416 = vpop.f32.mrf.mxu0
      %417 = vdwg.mxu0
      %v418 = vpack.c.bf16 %v415, %v415
      %420 = vrot.lane.b32.xlu0 %v418, 120
      %v421 = vpop.permute.xlu0 %420
      %422 = vrot.lane.b32.xlu0 %v418, 112
      %v423 = vpop.permute.xlu0 %422
      %424 = vrot.lane.b32.xlu0 %v418, 104
      %v425 = vpop.permute.xlu0 %424
      %v428 = vpack.i.b16 %v421, %v418
      %v429 = vshrl.u32 %v418, 16
      %v430 = vshrl.u32 %v421, 16
      %v431 = vpack.i.b16 %v430, %v429
      %v434 = vpack.i.b16 %v425, %v423
      %v435 = vshrl.u32 %v423, 16
      %v436 = vshrl.u32 %v425, 16
      %v437 = vpack.i.b16 %v436, %v435
      %v440 = vunpack.c.l.s4 1983009808
      %v441 = vunpack.c.0.s8 %v440
      %v442 = vperm.slane %v428, %v441
      %v445 = vunpack.c.l.s4 1983009808
      %v446 = vunpack.c.0.s8 %v445
      %v447 = vperm.slane %v434, %v446
      %v448 = vrot.slane %v447, 4
      %vm449 = vcmask 1047556
      %v450 = vsel %vm449, %v448, %v442
      %v451 = vrot.slane %v442, 4
      %v452 = vsel %vm449, %v447, %v451
      %v454 = vunpack.c.l.s4 1934713408
      %v455 = vunpack.c.0.s8 %v454
      %v456 = vperm.slane %v450, %v455
      %v458 = vunpack.c.l.s4 1934713408
      %v459 = vunpack.c.0.s8 %v458
      %v460 = vperm.slane %v452, %v459
      %v461 = vrot.slane %v456, 4
      %v462 = vsel %vm449, 0, %v461
      %v463 = vrot.slane %v460, 4
      %v464 = vsel %vm449, 0, %v463
      %v467 = vunpack.c.l.s4 1983009808
      %v468 = vunpack.c.0.s8 %v467
      %v469 = vperm.slane %v431, %v468
      %v472 = vunpack.c.l.s4 1983009808
      %v473 = vunpack.c.0.s8 %v472
      %v474 = vperm.slane %v437, %v473
      %v475 = vrot.slane %v474, 4
      %v476 = vsel %vm449, %v475, %v469
      %v477 = vrot.slane %v469, 4
      %v478 = vsel %vm449, %v474, %v477
      %v480 = vunpack.c.l.s4 1934713408
      %v481 = vunpack.c.0.s8 %v480
      %v482 = vperm.slane %v476, %v481
      %v484 = vunpack.c.l.s4 1934713408
      %v485 = vunpack.c.0.s8 %v484
      %v486 = vperm.slane %v478, %v485
      %v487 = vrot.slane %v482, 4
      %v488 = vsel %vm449, 0, %v487
      %v489 = vrot.slane %v486, 4
      %v490 = vsel %vm449, 0, %v489
      %v491 = vsel %vm449, %v463, %v456
      %v493 = vunpack.c.l.s4 1983009808
      %v494 = vunpack.c.0.s8 %v493
      %v495 = vperm.slane %v491, %v494
      %v496 = vrot.slane %v464, 4
      %v497 = vsel %vm449, %v496, %v462
      %v499 = vunpack.c.l.s4 1983009808
      %v500 = vunpack.c.0.s8 %v499
      %v501 = vperm.slane %v497, %v500
      %v502 = vrot.slane %v501, 4
      %v503 = vsel %vm449, %v502, %v495
      %v505 = vunpack.c.l.s4 1934713408
      %v506 = vunpack.c.0.s8 %v505
      %v507 = vperm.slane %v503, %v506
      %v508 = vrot.slane %v507, 4
      %v509 = vsel %vm449, 0, %v508
      %v510 = vsel %vm449, %v489, %v482
      %v512 = vunpack.c.l.s4 1983009808
      %v513 = vunpack.c.0.s8 %v512
      %v514 = vperm.slane %v510, %v513
      %v515 = vrot.slane %v490, 4
      %v516 = vsel %vm449, %v515, %v488
      %v518 = vunpack.c.l.s4 1983009808
      %v519 = vunpack.c.0.s8 %v518
      %v520 = vperm.slane %v516, %v519
      %v521 = vrot.slane %v520, 4
      %v522 = vsel %vm449, %v521, %v514
      %v524 = vunpack.c.l.s4 1934713408
      %v525 = vunpack.c.0.s8 %v524
      %v526 = vperm.slane %v522, %v525
      %v527 = vrot.slane %v526, 4
      %v528 = vsel %vm449, 0, %v527
      %v531 = vpack.i.b16 %v526, %v507
      %v532 = vshrl.u32 %v507, 16
      %v533 = vshrl.u32 %v526, 16
      %v534 = vpack.i.b16 %v533, %v532
      %v537 = vpack.i.b16 %v528, %v509
      %v538 = vshrl.u32 %v509, 16
      %v539 = vshrl.u32 %v528, 16
      %v540 = vpack.i.b16 %v539, %v538
      %541 = vrot.lane.b32.xlu0 %v418, 96
      %v542 = vpop.permute.xlu0 %541
      %543 = vrot.lane.b32.xlu0 %v421, 96
      %v544 = vpop.permute.xlu0 %543
      %545 = vrot.lane.b32.xlu0 %v423, 96
      %v546 = vpop.permute.xlu0 %545
      %547 = vrot.lane.b32.xlu0 %v425, 96
      %v548 = vpop.permute.xlu0 %547
      %v551 = vpack.i.b16 %v544, %v542
      %v552 = vshrl.u32 %v542, 16
      %v553 = vshrl.u32 %v544, 16
      %v554 = vpack.i.b16 %v553, %v552
      %v557 = vpack.i.b16 %v548, %v546
      %v558 = vshrl.u32 %v546, 16
      %v559 = vshrl.u32 %v548, 16
      %v560 = vpack.i.b16 %v559, %v558
      %v563 = vunpack.c.l.s4 1983009808
      %v564 = vunpack.c.0.s8 %v563
      %v565 = vperm.slane %v551, %v564
      %v568 = vunpack.c.l.s4 1983009808
      %v569 = vunpack.c.0.s8 %v568
      %v570 = vperm.slane %v557, %v569
      %v571 = vrot.slane %v570, 4
      %v572 = vsel %vm449, %v571, %v565
      %v573 = vrot.slane %v565, 4
      %v574 = vsel %vm449, %v570, %v573
      %v576 = vunpack.c.l.s4 1934713408
      %v577 = vunpack.c.0.s8 %v576
      %v578 = vperm.slane %v572, %v577
      %v580 = vunpack.c.l.s4 1934713408
      %v581 = vunpack.c.0.s8 %v580
      %v582 = vperm.slane %v574, %v581
      %v583 = vrot.slane %v578, 4
      %v584 = vsel %vm449, 0, %v583
      %v585 = vrot.slane %v582, 4
      %v586 = vsel %vm449, 0, %v585
      %v589 = vunpack.c.l.s4 1983009808
      %v590 = vunpack.c.0.s8 %v589
      %v591 = vperm.slane %v554, %v590
      %v594 = vunpack.c.l.s4 1983009808
      %v595 = vunpack.c.0.s8 %v594
      %v596 = vperm.slane %v560, %v595
      %v597 = vrot.slane %v596, 4
      %v598 = vsel %vm449, %v597, %v591
      %v599 = vrot.slane %v591, 4
      %v600 = vsel %vm449, %v596, %v599
      %v602 = vunpack.c.l.s4 1934713408
      %v603 = vunpack.c.0.s8 %v602
      %v604 = vperm.slane %v598, %v603
      %v606 = vunpack.c.l.s4 1934713408
      %v607 = vunpack.c.0.s8 %v606
      %v608 = vperm.slane %v600, %v607
      %v609 = vrot.slane %v604, 4
      %v610 = vsel %vm449, 0, %v609
      %v611 = vrot.slane %v608, 4
      %v612 = vsel %vm449, 0, %v611
      %v613 = vsel %vm449, %v585, %v578
      %v615 = vunpack.c.l.s4 1983009808
      %v616 = vunpack.c.0.s8 %v615
      %v617 = vperm.slane %v613, %v616
      %v618 = vrot.slane %v586, 4
      %v619 = vsel %vm449, %v618, %v584
      %v621 = vunpack.c.l.s4 1983009808
      %v622 = vunpack.c.0.s8 %v621
      %v623 = vperm.slane %v619, %v622
      %v624 = vrot.slane %v623, 4
      %v625 = vsel %vm449, %v624, %v617
      %v627 = vunpack.c.l.s4 1934713408
      %v628 = vunpack.c.0.s8 %v627
      %v629 = vperm.slane %v625, %v628
      %v630 = vrot.slane %v629, 4
      %v631 = vsel %vm449, 0, %v630
      %v632 = vsel %vm449, %v611, %v604
      %v634 = vunpack.c.l.s4 1983009808
      %v635 = vunpack.c.0.s8 %v634
      %v636 = vperm.slane %v632, %v635
      %v637 = vrot.slane %v612, 4
      %v638 = vsel %vm449, %v637, %v610
      %v640 = vunpack.c.l.s4 1983009808
      %v641 = vunpack.c.0.s8 %v640
      %v642 = vperm.slane %v638, %v641
      %v643 = vrot.slane %v642, 4
      %v644 = vsel %vm449, %v643, %v636
      %v646 = vunpack.c.l.s4 1934713408
      %v647 = vunpack.c.0.s8 %v646
      %v648 = vperm.slane %v644, %v647
      %v649 = vrot.slane %v648, 4
      %v650 = vsel %vm449, 0, %v649
      %v653 = vpack.i.b16 %v648, %v629
      %v654 = vshrl.u32 %v629, 16
      %v655 = vshrl.u32 %v648, 16
      %v656 = vpack.i.b16 %v655, %v654
      %v659 = vpack.i.b16 %v650, %v631
      %v660 = vshrl.u32 %v631, 16
      %v661 = vshrl.u32 %v650, 16
      %v662 = vpack.i.b16 %v661, %v660
      %663 = vrot.lane.b32.xlu0 %v418, 64
      %v664 = vpop.permute.xlu0 %663
      %665 = vrot.lane.b32.xlu0 %v421, 64
      %v666 = vpop.permute.xlu0 %665
      %667 = vrot.lane.b32.xlu0 %v423, 64
      %v668 = vpop.permute.xlu0 %667
      %669 = vrot.lane.b32.xlu0 %v425, 64
      %v670 = vpop.permute.xlu0 %669
      %v673 = vpack.i.b16 %v666, %v664
      %v674 = vshrl.u32 %v664, 16
      %v675 = vshrl.u32 %v666, 16
      %v676 = vpack.i.b16 %v675, %v674
      %v679 = vpack.i.b16 %v670, %v668
      %v680 = vshrl.u32 %v668, 16
      %v681 = vshrl.u32 %v670, 16
      %v682 = vpack.i.b16 %v681, %v680
      %v685 = vunpack.c.l.s4 1983009808
      %v686 = vunpack.c.0.s8 %v685
      %v687 = vperm.slane %v673, %v686
      %v690 = vunpack.c.l.s4 1983009808
      %v691 = vunpack.c.0.s8 %v690
      %v692 = vperm.slane %v679, %v691
      %v693 = vrot.slane %v692, 4
      %v694 = vsel %vm449, %v693, %v687
      %v695 = vrot.slane %v687, 4
      %v696 = vsel %vm449, %v692, %v695
      %v698 = vunpack.c.l.s4 1934713408
      %v699 = vunpack.c.0.s8 %v698
      %v700 = vperm.slane %v694, %v699
      %v702 = vunpack.c.l.s4 1934713408
      %v703 = vunpack.c.0.s8 %v702
      %v704 = vperm.slane %v696, %v703
      %v705 = vrot.slane %v700, 4
      %v706 = vsel %vm449, 0, %v705
      %v707 = vrot.slane %v704, 4
      %v708 = vsel %vm449, 0, %v707
      %v711 = vunpack.c.l.s4 1983009808
      %v712 = vunpack.c.0.s8 %v711
      %v713 = vperm.slane %v676, %v712
      %v716 = vunpack.c.l.s4 1983009808
      %v717 = vunpack.c.0.s8 %v716
      %v718 = vperm.slane %v682, %v717
      %v719 = vrot.slane %v718, 4
      %v720 = vsel %vm449, %v719, %v713
      %v721 = vrot.slane %v713, 4
      %v722 = vsel %vm449, %v718, %v721
      %v724 = vunpack.c.l.s4 1934713408
      %v725 = vunpack.c.0.s8 %v724
      %v726 = vperm.slane %v720, %v725
      %v728 = vunpack.c.l.s4 1934713408
      %v729 = vunpack.c.0.s8 %v728
      %v730 = vperm.slane %v722, %v729
      %v731 = vrot.slane %v726, 4
      %v732 = vsel %vm449, 0, %v731
      %v733 = vrot.slane %v730, 4
      %v734 = vsel %vm449, 0, %v733
      %v735 = vsel %vm449, %v707, %v700
      %v737 = vunpack.c.l.s4 1983009808
      %v738 = vunpack.c.0.s8 %v737
      %v739 = vperm.slane %v735, %v738
      %v740 = vrot.slane %v708, 4
      %v741 = vsel %vm449, %v740, %v706
      %v743 = vunpack.c.l.s4 1983009808
      %v744 = vunpack.c.0.s8 %v743
      %v745 = vperm.slane %v741, %v744
      %v746 = vrot.slane %v745, 4
      %v747 = vsel %vm449, %v746, %v739
      %v749 = vunpack.c.l.s4 1934713408
      %v750 = vunpack.c.0.s8 %v749
      %v751 = vperm.slane %v747, %v750
      %v752 = vrot.slane %v751, 4
      %v753 = vsel %vm449, 0, %v752
      %v754 = vsel %vm449, %v733, %v726
      %v756 = vunpack.c.l.s4 1983009808
      %v757 = vunpack.c.0.s8 %v756
      %v758 = vperm.slane %v754, %v757
      %v759 = vrot.slane %v734, 4
      %v760 = vsel %vm449, %v759, %v732
      %v762 = vunpack.c.l.s4 1983009808
      %v763 = vunpack.c.0.s8 %v762
      %v764 = vperm.slane %v760, %v763
      %v765 = vrot.slane %v764, 4
      %v766 = vsel %vm449, %v765, %v758
      %v768 = vunpack.c.l.s4 1934713408
      %v769 = vunpack.c.0.s8 %v768
      %v770 = vperm.slane %v766, %v769
      %v771 = vrot.slane %v770, 4
      %v772 = vsel %vm449, 0, %v771
      %v775 = vpack.i.b16 %v770, %v751
      %v776 = vshrl.u32 %v751, 16
      %v777 = vshrl.u32 %v770, 16
      %v778 = vpack.i.b16 %v777, %v776
      %v781 = vpack.i.b16 %v772, %v753
      %v782 = vshrl.u32 %v753, 16
      %v783 = vshrl.u32 %v772, 16
      %v784 = vpack.i.b16 %v783, %v782
      %vm785 = vcmask 64512
      %v787 = vsel %vm785, %v531, 0
      %v790 = vsel %vm785, %v653, 0
      %792 = vmatpush.bf16.xpose.msra.mxu0 0
      %793 = vmatpush.bf16.xpose.msra.mxu0 0
      %794 = vmatpush.bf16.xpose.msra.mxu0 0
      %795 = vmatpush.bf16.xpose.msra.mxu0 0
      %796 = vmatpush.bf16.xpose.msra.mxu0 0
      %797 = vmatpush.bf16.xpose.msra.mxu0 0
      %798 = vmatpush.bf16.xpose.msra.mxu0 0
      %799 = vmatpush.bf16.xpose.msra.mxu0 %v790
      %800 = vmatmul.bf16.gmra.mxu0 %v787
      %v801 = vpop.f32.mrf.mxu0
      %v802 = vadd.f32 0.0, %v801
      %v803 = vpop.f32.mrf.mxu0
      %804 = vdwg.mxu0
      %v806 = vsel %vm785, %v534, 0
      %v809 = vsel %vm785, %v656, 0
      %811 = vmatpush.bf16.xpose.msra.mxu0 0
      %812 = vmatpush.bf16.xpose.msra.mxu0 0
      %813 = vmatpush.bf16.xpose.msra.mxu0 0
      %814 = vmatpush.bf16.xpose.msra.mxu0 0
      %815 = vmatpush.bf16.xpose.msra.mxu0 0
      %816 = vmatpush.bf16.xpose.msra.mxu0 0
      %817 = vmatpush.bf16.xpose.msra.mxu0 0
      %818 = vmatpush.bf16.xpose.msra.mxu0 %v809
      %819 = vmatmul.bf16.gmra.mxu0 %v806
      %v820 = vpop.f32.mrf.mxu0
      %v821 = vadd.f32 0.0, %v820
      %v822 = vpop.f32.mrf.mxu0
      %823 = vdwg.mxu0
      %v825 = vsel %vm785, %v537, 0
      %v828 = vsel %vm785, %v659, 0
      %830 = vmatpush.bf16.xpose.msra.mxu0 0
      %831 = vmatpush.bf16.xpose.msra.mxu0 0
      %832 = vmatpush.bf16.xpose.msra.mxu0 0
      %833 = vmatpush.bf16.xpose.msra.mxu0 0
      %834 = vmatpush.bf16.xpose.msra.mxu0 0
      %835 = vmatpush.bf16.xpose.msra.mxu0 0
      %836 = vmatpush.bf16.xpose.msra.mxu0 0
      %837 = vmatpush.bf16.xpose.msra.mxu0 %v828
      %838 = vmatmul.bf16.gmra.mxu0 %v825
      %v839 = vpop.f32.mrf.mxu0
      %v840 = vadd.f32 0.0, %v839
      %v841 = vpop.f32.mrf.mxu0
      %842 = vdwg.mxu0
      %v844 = vsel %vm785, %v540, 0
      %v847 = vsel %vm785, %v662, 0
      %849 = vmatpush.bf16.xpose.msra.mxu0 0
      %850 = vmatpush.bf16.xpose.msra.mxu0 0
      %851 = vmatpush.bf16.xpose.msra.mxu0 0
      %852 = vmatpush.bf16.xpose.msra.mxu0 0
      %853 = vmatpush.bf16.xpose.msra.mxu0 0
      %854 = vmatpush.bf16.xpose.msra.mxu0 0
      %855 = vmatpush.bf16.xpose.msra.mxu0 0
      %856 = vmatpush.bf16.xpose.msra.mxu0 %v847
      %857 = vmatmul.bf16.gmra.mxu0 %v844
      %v858 = vpop.f32.mrf.mxu0
      %v859 = vadd.f32 0.0, %v858
      %v860 = vpop.f32.mrf.mxu0
      %861 = vdwg.mxu0
      %v863 = vperm.slane %v346, 0
      %v865 = vadd.f32 %v802, %v863
      %v866 = vadd.f32 %v821, %v863
      %v867 = vadd.f32 %v840, %v863
      %v868 = vadd.f32 %v859, %v863
      %v869 = vsel %vm785, %v865, -inf
      %870 = vmax.xlane.f32.xlu0 %v869
      %v871 = vpop.xlane.xlu0 %870
      %v872 = vsel %vm785, %v866, -inf
      %873 = vmax.xlane.f32.xlu0 %v872
      %v874 = vpop.xlane.xlu0 %873
      %v875 = vsel %vm785, %v867, -inf
      %876 = vmax.xlane.f32.xlu0 %v875
      %v877 = vpop.xlane.xlu0 %876
      %v878 = vsel %vm785, %v868, -inf
      %879 = vmax.xlane.f32.xlu0 %v878
      %v880 = vpop.xlane.xlu0 %879
      %v881 = vsub.f32 %v865, %v871
      %v882 = vsub.f32 %v866, %v874
      %v883 = vsub.f32 %v867, %v877
      %v884 = vsub.f32 %v868, %v880
      %v885 = vmul.f32 %v881, 1.442695
      %v886 = vpow.pop %v885
      %v887 = vmul.f32 %v882, 1.442695
      %v888 = vpow.pop %v887
      %v889 = vmul.f32 %v883, 1.442695
      %v890 = vpow.pop %v889
      %v891 = vmul.f32 %v884, 1.442695
      %v892 = vpow.pop %v891
      %v893 = vsel %vm785, %v886, 0.0
      %894 = vadd.xlane.f32.xlu0 %v893
      %v895 = vpop.xlane.xlu0 %894
      %v896 = vsel %vm785, %v888, 0.0
      %897 = vadd.xlane.f32.xlu0 %v896
      %v898 = vpop.xlane.xlu0 %897
      %v899 = vsel %vm785, %v890, 0.0
      %900 = vadd.xlane.f32.xlu0 %v899
      %v901 = vpop.xlane.xlu0 %900
      %v902 = vsel %vm785, %v892, 0.0
      %903 = vadd.xlane.f32.xlu0 %v902
      %v904 = vpop.xlane.xlu0 %903
      %v905 = vpack.c.bf16 %v886, %v886
      %v906 = vpack.c.bf16 %v888, %v888
      %v907 = vpack.c.bf16 %v890, %v890
      %v908 = vpack.c.bf16 %v892, %v892
      %v910 = vsel %vm785, %v905, 0
      %vm912 = vcmask 1043456
      %v914 = vsel %vm912, %v775, 0
      %916 = vmatpush.bf16.msra.mxu0 0
      %917 = vmatpush.bf16.msra.mxu0 0
      %918 = vmatpush.bf16.msra.mxu0 0
      %919 = vmatpush.bf16.msra.mxu0 0
      %920 = vmatpush.bf16.msra.mxu0 0
      %921 = vmatpush.bf16.msra.mxu0 0
      %922 = vmatpush.bf16.msra.mxu0 0
      %923 = vmatpush.bf16.msra.mxu0 %v914
      %924 = vmatmul.bf16.gmra.mxu0 %v910
      %v925 = vpop.f32.mrf.mxu0
      %v926 = vadd.f32 0.0, %v925
      %v927 = vpop.f32.mrf.mxu0
      %928 = vdwg.mxu0
      %v930 = vsel %vm785, %v906, 0
      %v933 = vsel %vm912, %v778, 0
      %935 = vmatpush.bf16.msra.mxu0 0
      %936 = vmatpush.bf16.msra.mxu0 0
      %937 = vmatpush.bf16.msra.mxu0 0
      %938 = vmatpush.bf16.msra.mxu0 0
      %939 = vmatpush.bf16.msra.mxu0 0
      %940 = vmatpush.bf16.msra.mxu0 0
      %941 = vmatpush.bf16.msra.mxu0 0
      %942 = vmatpush.bf16.msra.mxu0 %v933
      %943 = vmatmul.bf16.gmra.mxu0 %v930
      %v944 = vpop.f32.mrf.mxu0
      %v945 = vadd.f32 0.0, %v944
      %v946 = vpop.f32.mrf.mxu0
      %947 = vdwg.mxu0
      %v949 = vsel %vm785, %v907, 0
      %v952 = vsel %vm912, %v781, 0
      %954 = vmatpush.bf16.msra.mxu0 0
      %955 = vmatpush.bf16.msra.mxu0 0
      %956 = vmatpush.bf16.msra.mxu0 0
      %957 = vmatpush.bf16.msra.mxu0 0
      %958 = vmatpush.bf16.msra.mxu0 0
      %959 = vmatpush.bf16.msra.mxu0 0
      %960 = vmatpush.bf16.msra.mxu0 0
      %961 = vmatpush.bf16.msra.mxu0 %v952
      %962 = vmatmul.bf16.gmra.mxu0 %v949
      %v963 = vpop.f32.mrf.mxu0
      %v964 = vadd.f32 0.0, %v963
      %v965 = vpop.f32.mrf.mxu0
      %966 = vdwg.mxu0
      %v968 = vsel %vm785, %v908, 0
      %v971 = vsel %vm912, %v784, 0
      %973 = vmatpush.bf16.msra.mxu0 0
      %974 = vmatpush.bf16.msra.mxu0 0
      %975 = vmatpush.bf16.msra.mxu0 0
      %976 = vmatpush.bf16.msra.mxu0 0
      %977 = vmatpush.bf16.msra.mxu0 0
      %978 = vmatpush.bf16.msra.mxu0 0
      %979 = vmatpush.bf16.msra.mxu0 0
      %980 = vmatpush.bf16.msra.mxu0 %v971
      %981 = vmatmul.bf16.gmra.mxu0 %v968
      %v982 = vpop.f32.mrf.mxu0
      %v983 = vadd.f32 0.0, %v982
      %v984 = vpop.f32.mrf.mxu0
      %985 = vdwg.mxu0
      %v986 = vrcp.pop %v895
      %v987 = vrcp.pop %v898
      %v988 = vrcp.pop %v901
      %v989 = vrcp.pop %v904
      %v990 = vmul.f32 %v926, %v986
      %v991 = vmul.f32 %v945, %v987
      %v992 = vmul.f32 %v964, %v988
      %v993 = vmul.f32 %v983, %v989
      %v994 = vpack.c.bf16 %v990, %v990
      %v995 = vpack.c.bf16 %v991, %v991
      %v996 = vpack.c.bf16 %v992, %v992
      %v997 = vpack.c.bf16 %v993, %v993
      %v1000 = vpack.i.b16 %v995, %v994
      %v1001 = vshrl.u32 %v994, 16
      %v1002 = vshrl.u32 %v995, 16
      %v1003 = vpack.i.b16 %v1002, %v1001
      %v1006 = vpack.i.b16 %v997, %v996
      %v1007 = vshrl.u32 %v996, 16
      %v1008 = vshrl.u32 %v997, 16
      %v1009 = vpack.i.b16 %v1008, %v1007
      %v1012 = vunpack.c.l.s4 1983009808
      %v1013 = vunpack.c.0.s8 %v1012
      %v1014 = vperm.slane %v1000, %v1013
      %v1017 = vunpack.c.l.s4 1983009808
      %v1018 = vunpack.c.0.s8 %v1017
      %v1019 = vperm.slane %v1006, %v1018
      %v1020 = vrot.slane %v1019, 4
      %v1021 = vsel %vm449, %v1020, %v1014
      %v1022 = vrot.slane %v1014, 4
      %v1023 = vsel %vm449, %v1019, %v1022
      %v1025 = vunpack.c.l.s4 1934713408
      %v1026 = vunpack.c.0.s8 %v1025
      %v1027 = vperm.slane %v1021, %v1026
      %v1029 = vunpack.c.l.s4 1934713408
      %v1030 = vunpack.c.0.s8 %v1029
      %v1031 = vperm.slane %v1023, %v1030
      %v1032 = vrot.slane %v1027, 4
      %v1033 = vsel %vm449, 0, %v1032
      %v1034 = vrot.slane %v1031, 4
      %v1035 = vsel %vm449, 0, %v1034
      %v1038 = vunpack.c.l.s4 1983009808
      %v1039 = vunpack.c.0.s8 %v1038
      %v1040 = vperm.slane %v1003, %v1039
      %v1043 = vunpack.c.l.s4 1983009808
      %v1044 = vunpack.c.0.s8 %v1043
      %v1045 = vperm.slane %v1009, %v1044
      %v1046 = vrot.slane %v1045, 4
      %v1047 = vsel %vm449, %v1046, %v1040
      %v1048 = vrot.slane %v1040, 4
      %v1049 = vsel %vm449, %v1045, %v1048
      %v1051 = vunpack.c.l.s4 1934713408
      %v1052 = vunpack.c.0.s8 %v1051
      %v1053 = vperm.slane %v1047, %v1052
      %v1055 = vunpack.c.l.s4 1934713408
      %v1056 = vunpack.c.0.s8 %v1055
      %v1057 = vperm.slane %v1049, %v1056
      %v1058 = vrot.slane %v1053, 4
      %v1059 = vsel %vm449, 0, %v1058
      %v1060 = vrot.slane %v1057, 4
      %v1061 = vsel %vm449, 0, %v1060
      %v1062 = vsel %vm449, %v1034, %v1027
      %v1064 = vunpack.c.l.s4 1983009808
      %v1065 = vunpack.c.0.s8 %v1064
      %v1066 = vperm.slane %v1062, %v1065
      %v1067 = vrot.slane %v1035, 4
      %v1068 = vsel %vm449, %v1067, %v1033
      %v1070 = vunpack.c.l.s4 1983009808
      %v1071 = vunpack.c.0.s8 %v1070
      %v1072 = vperm.slane %v1068, %v1071
      %v1073 = vrot.slane %v1072, 4
      %v1074 = vsel %vm449, %v1073, %v1066
      %v1076 = vunpack.c.l.s4 1934713408
      %v1077 = vunpack.c.0.s8 %v1076
      %v1078 = vperm.slane %v1074, %v1077
      %v1079 = vrot.slane %v1078, 4
      %v1080 = vsel %vm449, 0, %v1079
      %v1081 = vsel %vm449, %v1060, %v1053
      %v1083 = vunpack.c.l.s4 1983009808
      %v1084 = vunpack.c.0.s8 %v1083
      %v1085 = vperm.slane %v1081, %v1084
      %v1086 = vrot.slane %v1061, 4
      %v1087 = vsel %vm449, %v1086, %v1059
      %v1089 = vunpack.c.l.s4 1983009808
      %v1090 = vunpack.c.0.s8 %v1089
      %v1091 = vperm.slane %v1087, %v1090
      %v1092 = vrot.slane %v1091, 4
      %v1093 = vsel %vm449, %v1092, %v1085
      %v1095 = vunpack.c.l.s4 1934713408
      %v1096 = vunpack.c.0.s8 %v1095
      %v1097 = vperm.slane %v1093, %v1096
      %v1098 = vrot.slane %v1097, 4
      %v1099 = vsel %vm449, 0, %v1098
      %v1102 = vpack.i.b16 %v1097, %v1078
      %v1103 = vshrl.u32 %v1078, 16
      %v1104 = vshrl.u32 %v1097, 16
      %v1105 = vpack.i.b16 %v1104, %v1103
      %v1108 = vpack.i.b16 %v1099, %v1080
      %v1109 = vshrl.u32 %v1080, 16
      %v1110 = vshrl.u32 %v1099, 16
      %v1111 = vpack.i.b16 %v1110, %v1109
      %v1112 = vunpack.c.l.b16 %v1105
      %v1113 = vpack.c.b16 %v1112, %v1112
      %1114 = vrot.lane.b32.xlu0 %v1113, 8
      %v1115 = vpop.permute.xlu0 %1114
      %v1116 = vunpack.c.l.b16 %v1108
      %v1117 = vpack.c.b16 %v1116, %v1116
      %1118 = vrot.lane.b32.xlu0 %v1117, 16
      %v1119 = vpop.permute.xlu0 %1118
      %v1120 = vunpack.c.l.b16 %v1111
      %v1121 = vpack.c.b16 %v1120, %v1120
      %1122 = vrot.lane.b32.xlu0 %v1121, 24
      %v1123 = vpop.permute.xlu0 %1122
      %v1126 = vsel %vm785, %v1102, %v1115
      %vm1127 = vcmask 130048
      %v1129 = vsel %vm1127, %v1126, %v1119
      %vm1130 = vcmask 195584
      %v1132 = vsel %vm1130, %v1129, %v1123
      %v1133 = vld [vmem:[%s4] sm:$0xf]
      %v1134 = vld [vmem:[%s4 + $0x4] sm:$0xf]
      %v1135 = vld [vmem:[%s4 + $0x8] sm:$0xf]
      %v1136 = vld [vmem:[%s4 + $0xc] sm:$0xf]
      %v1137 = vperm.slane %v345, 0
      %v1142 = vunpack.c.l.b16 %v1133
      %v1143 = vunpack.c.l.b16 %v1134
      %v1144 = vunpack.c.l.b16 %v1135
      %v1145 = vunpack.c.l.b16 %v1136
      %v1146 = vpack.c.b16 %v1143, %v1142
      %v1147 = vpack.c.b16 %v1145, %v1144
      %v1150 = vsel %vm347, %v1132, 0
      %1152 = vmatpush.bf16.msra.mxu0 0
      %1153 = vmatpush.bf16.msra.mxu0 0
      %1154 = vmatpush.bf16.msra.mxu0 0
      %1155 = vmatpush.bf16.msra.mxu0 0
      %1156 = vmatpush.bf16.msra.mxu0 0
      %1157 = vmatpush.bf16.msra.mxu0 0
      %1158 = vmatpush.bf16.msra.mxu0 %v1147
      %1159 = vmatpush.bf16.msra.mxu0 %v1146
      %1160 = vmatmul.bf16.gmra.mxu0 %v1150
      %v1161 = vpop.f32.mrf.mxu0
      %v1162 = vadd.f32 %v1137, %v1161
      %v1163 = vpop.f32.mrf.mxu0
      %1164 = vdwg.mxu0
      %v1165 = vadd.f32 %v344, %v1162
      %v1166 = vsel %vm347, %v1165, 0.0
      %1167 = vadd.xlane.f32.xlu0 %v1166
      %v1168 = vpop.xlane.xlu0 %1167
      %v1169 = vmul.f32 %v1168, %v357
      %v1170 = vsub.f32 %v1165, %v1169
      %v1171 = vmul.f32 %v1170, %v1170
      %v1172 = vsel %vm347, %v1171, 0.0
      %1173 = vadd.xlane.f32.xlu0 %v1172
      %v1174 = vpop.xlane.xlu0 %1173
      %v1175 = vmul.f32 %v1174, %v357
      %v1176 = vadd.f32 %v1175, 1e-06
      %v1177 = vrsqrt.pop %v1176
      %v1178 = vmul.f32 %v1177, %v1176
      %v1179 = vmul.f32 %v1178, %v1177
      %v1180 = vmul.f32 0.5, %v1179
      %v1181 = vsub.f32 1.5, %v1180
      %v1182 = vmul.f32 %v1177, %v1181
      %vm1183 = vweird.f32 %v1176
      %vm1184 = vweird.f32 %v1177
      %vm1185 = vmor %vm1183, %vm1184
      %v1186 = vsel %vm1185, %v1177, %v1182
      %v1187 = vmul.f32 %v1170, %v1186
      %v1188 = vperm.slane %v345, 4
      %v1189 = vmul.f32 %v1187, %v1188
      %v1190 = vperm.slane %v345, 5
      %v1191 = vadd.f32 %v1189, %v1190
      %v1192 = vpack.c.bf16 %v1191, %v1191
      %v1193 = vld [vmem:[%s5] sm:$0xf]
      %v1194 = vld [vmem:[%s5 + $0x4] sm:$0xf]
      %v1195 = vld [vmem:[%s5 + $0x8] sm:$0xf]
      %v1196 = vld [vmem:[%s5 + $0xc] sm:$0xf]
      %v1197 = vld [vmem:[%s6] sm:$0x1]
      %v1199 = vperm.slane %v1197, 0
      %v1205 = vunpack.c.l.b16 %v1193
      %v1206 = vunpack.c.l.b16 %v1194
      %v1207 = vunpack.c.l.b16 %v1195
      %v1208 = vunpack.c.l.b16 %v1196
      %v1209 = vpack.c.b16 %v1206, %v1205
      %v1210 = vpack.c.b16 %v1208, %v1207
      %v1214 = vsel %vm347, %v1192, 0
      %1216 = vmatpush.bf16.msra.mxu0 0
      %1217 = vmatpush.bf16.msra.mxu0 0
      %1218 = vmatpush.bf16.msra.mxu0 0
      %1219 = vmatpush.bf16.msra.mxu0 0
      %1220 = vmatpush.bf16.msra.mxu0 0
      %1221 = vmatpush.bf16.msra.mxu0 0
      %1222 = vmatpush.bf16.msra.mxu0 %v1210
      %1223 = vmatpush.bf16.msra.mxu0 %v1209
      %1224 = vmatmul.bf16.gmra.mxu0 %v1214
      %v1225 = vpop.f32.mrf.mxu0
      %v1226 = vadd.f32 %v1199, %v1225
      %v1227 = vpop.f32.mrf.mxu0
      %1228 = vdwg.mxu0
      %v1229 = vmul.f32 %v1226, 0.5
      %v1230 = vmul.f32 %v1226, 0.044715
      %v1231 = vmul.f32 %v1230, %v1226
      %v1232 = vmul.f32 %v1231, %v1226
      %v1233 = vadd.f32 %v1226, %v1232
      %v1234 = vmul.f32 %v1233, 0.7978846
      %v1235 = vtanh.pop %v1234
      %v1236 = vadd.f32 %v1235, 1.0
      %v1237 = vmul.f32 %v1229, %v1236
      %v1238 = vpack.c.bf16 %v1237, %v1237
      %v1239 = vld [vmem:[%s7] sm:$0xf]
      %v1240 = vld [vmem:[%s7 + $0x4] sm:$0xf]
      %v1241 = vld [vmem:[%s7 + $0x8] sm:$0xf]
      %v1242 = vld [vmem:[%s7 + $0xc] sm:$0xf]
      %v1243 = vld [vmem:[%s7 + $0x10] sm:$0xf]
      %v1244 = vld [vmem:[%s7 + $0x14] sm:$0xf]
      %v1245 = vld [vmem:[%s7 + $0x18] sm:$0xf]
      %v1246 = vld [vmem:[%s7 + $0x1c] sm:$0xf]
      %v1247 = vld [vmem:[%s7 + $0x20] sm:$0xf]
      %v1248 = vld [vmem:[%s7 + $0x24] sm:$0xf]
      %v1249 = vld [vmem:[%s7 + $0x28] sm:$0xf]
      %v1250 = vld [vmem:[%s7 + $0x2c] sm:$0xf]
      %v1251 = vld [vmem:[%s7 + $0x30] sm:$0xf]
      %v1252 = vld [vmem:[%s7 + $0x34] sm:$0xf]
      %v1253 = vld [vmem:[%s7 + $0x38] sm:$0xf]
      %v1254 = vld [vmem:[%s7 + $0x3c] sm:$0xf]
      %v1255 = vperm.slane %v345, 1
      %v1272 = vunpack.c.l.b16 %v1239
      %v1273 = vunpack.c.l.b16 %v1240
      %v1274 = vunpack.c.l.b16 %v1241
      %v1275 = vunpack.c.l.b16 %v1242
      %v1276 = vunpack.c.l.b16 %v1243
      %v1277 = vunpack.c.l.b16 %v1244
      %v1278 = vunpack.c.l.b16 %v1245
      %v1279 = vunpack.c.l.b16 %v1246
      %v1280 = vunpack.c.l.b16 %v1247
      %v1281 = vunpack.c.l.b16 %v1248
      %v1282 = vunpack.c.l.b16 %v1249
      %v1283 = vunpack.c.l.b16 %v1250
      %v1284 = vunpack.c.l.b16 %v1251
      %v1285 = vunpack.c.l.b16 %v1252
      %v1286 = vunpack.c.l.b16 %v1253
      %v1287 = vunpack.c.l.b16 %v1254
      %v1288 = vpack.c.b16 %v1273, %v1272
      %v1289 = vpack.c.b16 %v1275, %v1274
      %v1290 = vpack.c.b16 %v1277, %v1276
      %v1291 = vpack.c.b16 %v1279, %v1278
      %v1292 = vpack.c.b16 %v1281, %v1280
      %v1293 = vpack.c.b16 %v1283, %v1282
      %v1294 = vpack.c.b16 %v1285, %v1284
      %v1295 = vpack.c.b16 %v1287, %v1286
      %1304 = vmatpush.bf16.msra.mxu0 %v1295
      %1305 = vmatpush.bf16.msra.mxu0 %v1294
      %1306 = vmatpush.bf16.msra.mxu0 %v1293
      %1307 = vmatpush.bf16.msra.mxu0 %v1292
      %1308 = vmatpush.bf16.msra.mxu0 %v1291
      %1309 = vmatpush.bf16.msra.mxu0 %v1290
      %1310 = vmatpush.bf16.msra.mxu0 %v1289
      %1311 = vmatpush.bf16.msra.mxu0 %v1288
      %1312 = vmatmul.bf16.gmra.mxu0 %v1238
      %v1313 = vpop.f32.mrf.mxu0
      %v1314 = vadd.f32 %v1255, %v1313
      %v1315 = vpop.f32.mrf.mxu0
      %1316 = vdwg.mxu0
      %v1317 = vadd.f32 %v1165, %v1314
      %v1318 = vpack.c.bf16 %v1317, %v1317
      %vm1319 = vcmask 257024
      %1320 = vst.msk [vmem:[%s341] sm:$0xf] %vm1319, %v1318
      %p1321 = scmp.lt.s32.totalorder %s20, 1
      %s1322 = scalar_select %p1321, %s20, 1
      %s1323 = smul.addr %s1322, 4
      %s1324 = scalar_lea.vmem %s9, %s1323
      // Predicated region
      $region57: #{cbit_forward.3} parent=55 // pred_check
        %p1325 = pneg %p237
      $region58: #{cbit_forward.3} parent=55 // pred_check_branch
        %1327 = sbr.rel (%p1325) target = $region60
      $region59: #{cbit_forward.3} parent=55 // pred_region
        _
      $region60: #{cbit_forward.3} parent=55 // pred_fallthru
        _
    $region56: #{cbit_forward.3} parent=5 // pred_fallthru
      _
    %p1328 = scmp.le.s32.totalorder 2, %s15
    // Predicated region
    $region61: #{cbit_forward.3} parent=5 // pred_check
      %p1329 = pneg %p1328
    $region62: #{cbit_forward.3} parent=5 // pred_check_branch
      %1331 = sbr.rel (%p1329) target = $region64
    $region63: #{cbit_forward.3} parent=5 // pred_region
      %s1332 = ssub.s32 %s15, 2
      // Predicated region
      $region65: #{cbit_forward.3} parent=63 // pred_check
        %p1333 = pneg %p243
      $region66: #{cbit_forward.3} parent=63 // pred_check_branch
        %1335 = sbr.rel (%p1333) target = $region68
      $region67: #{cbit_forward.3} parent=63 // pred_region
        %p1336 = scmp.lt.s32.totalorder %s21, 1
        %s1337 = scalar_select %p1336, %s21, 1
        %s1338 = smul.addr %s1337, 4
        %s1339 = scalar_lea.vmem %s9, %s1338
      $region68: #{cbit_forward.3} parent=63 // pred_fallthru
        _
    $region64: #{cbit_forward.3} parent=5 // pred_fallthru
      _
  $region6: #{cbit_forward.3} parent=0 // loop_footer
    %s19 = sadd.s32 1, %s15
  $region7: #{cbit_forward.3} parent=0 // loop_footer_branch
    %14 = sbr.rel target = $region3
  $region8: #{cbit_forward.3} parent=0 // loop_exit
    _

</llo_original>
